<compile_context>
chip_gen: v6e
topology: v6e:2x2x1
jax: 0.10.0
libtpu: 0.0.40
codegen_flags: <defaults>
</compile_context>

<pallas_src>
import math

import jax
import jax.numpy as jnp
from jax import lax
from jax.experimental import pallas as pl
from jax.experimental.pallas import tpu as pltpu


# Fixed temporal vocabulary sizes (freq='h': no minute embedding).
_HOUR_SIZE, _WEEKDAY_SIZE, _DAY_SIZE, _MONTH_SIZE = 24, 7, 32, 13
# x_mark column -> row offset in the combined temporal table.
# Combined table layout: [hour | weekday | day | month]; x_mark columns are
# [month, day, weekday, hour] (as read in TemporalEmbedding.forward).
_TEMPORAL_FEATURES = (
    (3, 0),                                       # hour
    (2, _HOUR_SIZE),                              # weekday
    (1, _HOUR_SIZE + _WEEKDAY_SIZE),              # day
    (0, _HOUR_SIZE + _WEEKDAY_SIZE + _DAY_SIZE),  # month
)


def _round_up(x: int, m: int) -> int:
    return (x + m - 1) // m * m


def sinusoidal_table(n_pos: int, d_model: int) -> jnp.ndarray:
    """tab[:,0::2]=sin, tab[:,1::2]=cos — same formula as the PyTorch buffers."""
    assert d_model % 2 == 0, "d_model must be even (as in the PyTorch module)"
    position = jnp.arange(n_pos, dtype=jnp.float32)[:, None]
    div_term = jnp.exp(
        jnp.arange(0, d_model, 2, dtype=jnp.float32) * -(math.log(10000.0) / d_model)
    )
    angles = position * div_term[None, :]
    tab = jnp.zeros((n_pos, d_model), dtype=jnp.float32)
    tab = tab.at[:, 0::2].set(jnp.sin(angles))
    tab = tab.at[:, 1::2].set(jnp.cos(angles))
    return tab


def make_temporal_table(d_model: int) -> jnp.ndarray:
    """Concatenated FixedEmbedding tables, zero-padded to a multiple of 128 rows."""
    combined = jnp.concatenate(
        [sinusoidal_table(_HOUR_SIZE, d_model),
         sinusoidal_table(_WEEKDAY_SIZE, d_model),
         sinusoidal_table(_DAY_SIZE, d_model),
         sinusoidal_table(_MONTH_SIZE, d_model)], axis=0)
    rows = _round_up(combined.shape[0], 128)
    return jnp.pad(combined, ((0, rows - combined.shape[0]), (0, 0)))


def _data_embedding_kernel(x_ref, mark_ref, w_ref, b_ref, pe_ref, tab_ref, o_ref):
    # Blocks:
    #   x_ref   : (1, tile_l, c_in)     mark_ref: (1, tile_l, n_mark)
    #   w_ref   : (c_in, d_model)       b_ref   : (1, d_model)
    #   pe_ref  : (tile_l, d_model)     tab_ref : (t_rows, d_model)
    #   o_ref   : (1, tile_l, d_model)
    x_t = x_ref[0]                                   # (tile_l, c_in)
    w = w_ref[...]                                   # (c_in, d_model)
    tile_l, c_in = x_t.shape

    # TokenEmbedding (1x1 conv == per-position linear) + conv bias + positional
    # encoding.  c_in is tiny, so unrolled VPU FMAs beat a padded-K MXU matmul
    # and stay exact in f32.
    acc = pe_ref[...] + b_ref[...]                   # (tile_l, d_model)
    for c in range(c_in):
        acc = acc + x_t[:, c:c + 1] * w[c:c + 1, :]

    # TemporalEmbedding: sum of 4 fixed-table lookups == multi-hot @ table (MXU).
    marks = mark_ref[0].astype(jnp.int32)            # (tile_l, n_mark)  (x.long())
    t_rows = tab_ref.shape[0]
    lanes = lax.broadcasted_iota(jnp.int32, (tile_l, t_rows), 1)
    multi_hot = jnp.zeros((tile_l, t_rows), dtype=jnp.float32)
    for col, off in _TEMPORAL_FEATURES:
        idx = marks[:, col:col + 1] + off            # (tile_l, 1)
        multi_hot = multi_hot + (lanes == idx).astype(jnp.float32)
    acc = acc + jnp.dot(multi_hot, tab_ref[...],
                        preferred_element_type=jnp.float32)

    # TODO(synk): nn.Dropout(p=0.1) is treated as identity (eval / inference mode).
    o_ref[0] = acc.astype(o_ref.dtype)


def data_embedding_forward(x, x_mark, conv_w, conv_b, pe_table, temporal_table,
                           *, max_tile_l: int = 512):
    """DataEmbedding.forward.  x: (B, L, c_in) f32, x_mark: (B, L, 4) f32 indices."""
    B, L, c_in = x.shape
    n_mark = x_mark.shape[-1]
    d_model = conv_w.shape[-1]
    t_rows = temporal_table.shape[0]

    # Large row tiles (multiple of 8); cdiv grid lets Pallas mask the ragged last
    # block instead of degenerating to a single huge (L, d_model) block.
    tile_l = min(max_tile_l, _round_up(L, 8))
    grid = (B, pl.cdiv(L, tile_l))

    bias2d = conv_b.reshape(1, d_model)

    return pl.pallas_call(
        _data_embedding_kernel,
        out_shape=jax.ShapeDtypeStruct((B, L, d_model), x.dtype),
        grid=grid,
        in_specs=[
            pl.BlockSpec((1, tile_l, c_in), lambda b, l: (b, l, 0)),    # x
            pl.BlockSpec((1, tile_l, n_mark), lambda b, l: (b, l, 0)),  # x_mark
            pl.BlockSpec((c_in, d_model), lambda b, l: (0, 0)),         # conv weight
            pl.BlockSpec((1, d_model), lambda b, l: (0, 0)),            # conv bias
            pl.BlockSpec((tile_l, d_model), lambda b, l: (l, 0)),       # pos. enc.
            pl.BlockSpec((t_rows, d_model), lambda b, l: (0, 0)),       # temporal tbl
        ],
        out_specs=pl.BlockSpec((1, tile_l, d_model), lambda b, l: (b, l, 0)),
        compiler_params=pltpu.CompilerParams(
            dimension_semantics=("parallel", "parallel")),
    )(x, x_mark, conv_w, bias2d, pe_table, temporal_table)


if __name__ == "__main__":
    key = jax.random.PRNGKey(0)
    B, L, c_in, d_model, max_len = 2, 96, 7, 128, 5000

    k_x, k_w, k_b, k_mo, k_dy, k_wd, k_hr = jax.random.split(key, 7)
    x = jax.random.normal(k_x, (B, L, c_in), dtype=jnp.float32)
    month = jax.random.randint(k_mo, (B, L), 0, _MONTH_SIZE)
    day = jax.random.randint(k_dy, (B, L), 0, _DAY_SIZE)
    weekday = jax.random.randint(k_wd, (B, L), 0, _WEEKDAY_SIZE)
    hour = jax.random.randint(k_hr, (B, L), 0, _HOUR_SIZE)
    x_mark = jnp.stack([month, day, weekday, hour], axis=-1).astype(jnp.float32)

    # Conv1d(c_in, d_model, 1) params: kaiming_normal_ weight (fan_in, leaky_relu)
    # + PyTorch-default uniform bias.
    gain = math.sqrt(2.0 / (1.0 + 0.01 ** 2))
    conv_w = (gain / math.sqrt(c_in)) * jax.random.normal(
        k_w, (c_in, d_model), dtype=jnp.float32)
    bound = 1.0 / math.sqrt(c_in)
    conv_b = jax.random.uniform(k_b, (d_model,), jnp.float32, -bound, bound)

    pe_table = sinusoidal_table(max_len, d_model)   # PositionalEmbedding.pe
    temporal_table = make_temporal_table(d_model)   # concatenated FixedEmbedding tables

    out = jax.block_until_ready(
        data_embedding_forward(x, x_mark, conv_w, conv_b, pe_table, temporal_table))

    # Pure-JAX reference of the forward pass.
    idx = x_mark.astype(jnp.int32)
    hour_tab = sinusoidal_table(_HOUR_SIZE, d_model)
    weekday_tab = sinusoidal_table(_WEEKDAY_SIZE, d_model)
    day_tab = sinusoidal_table(_DAY_SIZE, d_model)
    month_tab = sinusoidal_table(_MONTH_SIZE, d_model)
    ref = (jnp.einsum("blc,cd->bld", x, conv_w, precision="highest")
           + conv_b[None, None, :]
           + pe_table[:L][None, :, :]
           + hour_tab[idx[..., 3]] + weekday_tab[idx[..., 2]]
           + day_tab[idx[..., 1]] + month_tab[idx[..., 0]])

    assert out.shape == (B, L, d_model)
    assert out.dtype == jnp.float32
    # atol allows for possible bf16-pass MXU rounding of the multi-hot @ table matmul.
    assert jnp.allclose(out, ref, atol=1e-2, rtol=1e-3), "mismatch vs reference"

    print("KERNEL_OK")
</pallas_src>

<mosaic_0001>
module attributes {stable_mosaic.version = 11 : i64} {
  func.func @_data_embedding_kernel(%arg0: i32, %arg1: i32, %arg2: memref<1x96x7xf32, #tpu.memory_space<vmem>>, %arg3: memref<1x96x4xf32, #tpu.memory_space<vmem>>, %arg4: memref<7x128xf32, #tpu.memory_space<vmem>>, %arg5: memref<1x128xf32, #tpu.memory_space<vmem>>, %arg6: memref<96x128xf32, #tpu.memory_space<vmem>>, %arg7: memref<128x128xf32, #tpu.memory_space<vmem>>, %arg8: memref<1x96x128xf32, #tpu.memory_space<vmem>>) attributes {dimension_semantics = [#tpu.dimension_semantics<parallel>, #tpu.dimension_semantics<parallel>], iteration_bounds = array<i64: 2, 1>, scalar_prefetch = 0 : i64, scratch_operands = 0 : i64, tpu.core_type = #tpu.core_type<tc>, window_params = [{transform_indices = @transform_0, window_bounds = array<i64: 1, 96, 7>}, {transform_indices = @transform_1, window_bounds = array<i64: 1, 96, 4>}, {pipeline_mode = #tpu.pipeline_mode<synchronous>, transform_indices = @transform_2, window_bounds = array<i64: 7, 128>}, {pipeline_mode = #tpu.pipeline_mode<synchronous>, transform_indices = @transform_3, window_bounds = array<i64: 1, 128>}, {transform_indices = @transform_4, window_bounds = array<i64: 96, 128>}, {pipeline_mode = #tpu.pipeline_mode<synchronous>, transform_indices = @transform_5, window_bounds = array<i64: 128, 128>}, {transform_indices = @transform_6, window_bounds = array<i64: 1, 96, 128>}]} {
    %c0 = arith.constant 0 : index
    %c0_0 = arith.constant 0 : index
    %c0_1 = arith.constant 0 : index
    %0 = vector.load %arg2[%c0, %c0_0, %c0_1] : memref<1x96x7xf32, #tpu.memory_space<vmem>>, vector<1x96x7xf32>
    %1 = vector.shape_cast %0 : vector<1x96x7xf32> to vector<96x7xf32>
    %c0_2 = arith.constant 0 : index
    %c0_3 = arith.constant 0 : index
    %2 = vector.load %arg4[%c0_2, %c0_3] : memref<7x128xf32, #tpu.memory_space<vmem>>, vector<7x128xf32>
    %c0_4 = arith.constant 0 : index
    %c0_5 = arith.constant 0 : index
    %3 = vector.load %arg6[%c0_4, %c0_5] : memref<96x128xf32, #tpu.memory_space<vmem>>, vector<96x128xf32>
    %c0_6 = arith.constant 0 : index
    %c0_7 = arith.constant 0 : index
    %4 = vector.load %arg5[%c0_6, %c0_7] : memref<1x128xf32, #tpu.memory_space<vmem>>, vector<1x128xf32>
    %5 = vector.broadcast %4 : vector<1x128xf32> to vector<96x128xf32>
    %6 = arith.addf %3, %5 : vector<96x128xf32>
    %7 = vector.extract_strided_slice %1 {offsets = [0, 0], sizes = [96, 1], strides = [1, 1]} : vector<96x7xf32> to vector<96x1xf32>
    %8 = vector.extract_strided_slice %2 {offsets = [0, 0], sizes = [1, 128], strides = [1, 1]} : vector<7x128xf32> to vector<1x128xf32>
    %9 = vector.broadcast %7 : vector<96x1xf32> to vector<96x128xf32>
    %10 = vector.broadcast %8 : vector<1x128xf32> to vector<96x128xf32>
    %11 = arith.mulf %9, %10 : vector<96x128xf32>
    %12 = arith.addf %6, %11 : vector<96x128xf32>
    %13 = vector.extract_strided_slice %1 {offsets = [0, 1], sizes = [96, 1], strides = [1, 1]} : vector<96x7xf32> to vector<96x1xf32>
    %14 = vector.extract_strided_slice %2 {offsets = [1, 0], sizes = [1, 128], strides = [1, 1]} : vector<7x128xf32> to vector<1x128xf32>
    %15 = vector.broadcast %13 : vector<96x1xf32> to vector<96x128xf32>
    %16 = vector.broadcast %14 : vector<1x128xf32> to vector<96x128xf32>
    %17 = arith.mulf %15, %16 : vector<96x128xf32>
    %18 = arith.addf %12, %17 : vector<96x128xf32>
    %19 = vector.extract_strided_slice %1 {offsets = [0, 2], sizes = [96, 1], strides = [1, 1]} : vector<96x7xf32> to vector<96x1xf32>
    %20 = vector.extract_strided_slice %2 {offsets = [2, 0], sizes = [1, 128], strides = [1, 1]} : vector<7x128xf32> to vector<1x128xf32>
    %21 = vector.broadcast %19 : vector<96x1xf32> to vector<96x128xf32>
    %22 = vector.broadcast %20 : vector<1x128xf32> to vector<96x128xf32>
    %23 = arith.mulf %21, %22 : vector<96x128xf32>
    %24 = arith.addf %18, %23 : vector<96x128xf32>
    %25 = vector.extract_strided_slice %1 {offsets = [0, 3], sizes = [96, 1], strides = [1, 1]} : vector<96x7xf32> to vector<96x1xf32>
    %26 = vector.extract_strided_slice %2 {offsets = [3, 0], sizes = [1, 128], strides = [1, 1]} : vector<7x128xf32> to vector<1x128xf32>
    %27 = vector.broadcast %25 : vector<96x1xf32> to vector<96x128xf32>
    %28 = vector.broadcast %26 : vector<1x128xf32> to vector<96x128xf32>
    %29 = arith.mulf %27, %28 : vector<96x128xf32>
    %30 = arith.addf %24, %29 : vector<96x128xf32>
    %31 = vector.extract_strided_slice %1 {offsets = [0, 4], sizes = [96, 1], strides = [1, 1]} : vector<96x7xf32> to vector<96x1xf32>
    %32 = vector.extract_strided_slice %2 {offsets = [4, 0], sizes = [1, 128], strides = [1, 1]} : vector<7x128xf32> to vector<1x128xf32>
    %33 = vector.broadcast %31 : vector<96x1xf32> to vector<96x128xf32>
    %34 = vector.broadcast %32 : vector<1x128xf32> to vector<96x128xf32>
    %35 = arith.mulf %33, %34 : vector<96x128xf32>
    %36 = arith.addf %30, %35 : vector<96x128xf32>
    %37 = vector.extract_strided_slice %1 {offsets = [0, 5], sizes = [96, 1], strides = [1, 1]} : vector<96x7xf32> to vector<96x1xf32>
    %38 = vector.extract_strided_slice %2 {offsets = [5, 0], sizes = [1, 128], strides = [1, 1]} : vector<7x128xf32> to vector<1x128xf32>
    %39 = vector.broadcast %37 : vector<96x1xf32> to vector<96x128xf32>
    %40 = vector.broadcast %38 : vector<1x128xf32> to vector<96x128xf32>
    %41 = arith.mulf %39, %40 : vector<96x128xf32>
    %42 = arith.addf %36, %41 : vector<96x128xf32>
    %43 = vector.extract_strided_slice %1 {offsets = [0, 6], sizes = [96, 1], strides = [1, 1]} : vector<96x7xf32> to vector<96x1xf32>
    %44 = vector.extract_strided_slice %2 {offsets = [6, 0], sizes = [1, 128], strides = [1, 1]} : vector<7x128xf32> to vector<1x128xf32>
    %45 = vector.broadcast %43 : vector<96x1xf32> to vector<96x128xf32>
    %46 = vector.broadcast %44 : vector<1x128xf32> to vector<96x128xf32>
    %47 = arith.mulf %45, %46 : vector<96x128xf32>
    %48 = arith.addf %42, %47 : vector<96x128xf32>
    %c0_8 = arith.constant 0 : index
    %c0_9 = arith.constant 0 : index
    %c0_10 = arith.constant 0 : index
    %49 = vector.load %arg3[%c0_8, %c0_9, %c0_10] : memref<1x96x4xf32, #tpu.memory_space<vmem>>, vector<1x96x4xf32>
    %50 = vector.shape_cast %49 : vector<1x96x4xf32> to vector<96x4xf32>
    %51 = arith.fptosi %50 : vector<96x4xf32> to vector<96x4xi32>
    %52 = tpu.iota {dimensions = array<i32: 1>} : vector<96x128xi32>
    %cst = arith.constant 0.000000e+00 : f32
    %53 = vector.broadcast %cst : f32 to vector<96x128xf32>
    %54 = vector.extract_strided_slice %51 {offsets = [0, 3], sizes = [96, 1], strides = [1, 1]} : vector<96x4xi32> to vector<96x1xi32>
    %c0_i32 = arith.constant 0 : i32
    %55 = vector.broadcast %c0_i32 : i32 to vector<96x1xi32>
    %56 = arith.addi %54, %55 : vector<96x1xi32>
    %57 = vector.broadcast %56 : vector<96x1xi32> to vector<96x128xi32>
    %58 = arith.cmpi eq, %52, %57 : vector<96x128xi32>
    %59 = arith.extui %58 : vector<96x128xi1> to vector<96x128xi32>
    %60 = arith.sitofp %59 : vector<96x128xi32> to vector<96x128xf32>
    %61 = arith.addf %53, %60 : vector<96x128xf32>
    %62 = vector.extract_strided_slice %51 {offsets = [0, 2], sizes = [96, 1], strides = [1, 1]} : vector<96x4xi32> to vector<96x1xi32>
    %c24_i32 = arith.constant 24 : i32
    %63 = vector.broadcast %c24_i32 : i32 to vector<96x1xi32>
    %64 = arith.addi %62, %63 : vector<96x1xi32>
    %65 = vector.broadcast %64 : vector<96x1xi32> to vector<96x128xi32>
    %66 = arith.cmpi eq, %52, %65 : vector<96x128xi32>
    %67 = arith.extui %66 : vector<96x128xi1> to vector<96x128xi32>
    %68 = arith.sitofp %67 : vector<96x128xi32> to vector<96x128xf32>
    %69 = arith.addf %61, %68 : vector<96x128xf32>
    %70 = vector.extract_strided_slice %51 {offsets = [0, 1], sizes = [96, 1], strides = [1, 1]} : vector<96x4xi32> to vector<96x1xi32>
    %c31_i32 = arith.constant 31 : i32
    %71 = vector.broadcast %c31_i32 : i32 to vector<96x1xi32>
    %72 = arith.addi %70, %71 : vector<96x1xi32>
    %73 = vector.broadcast %72 : vector<96x1xi32> to vector<96x128xi32>
    %74 = arith.cmpi eq, %52, %73 : vector<96x128xi32>
    %75 = arith.extui %74 : vector<96x128xi1> to vector<96x128xi32>
    %76 = arith.sitofp %75 : vector<96x128xi32> to vector<96x128xf32>
    %77 = arith.addf %69, %76 : vector<96x128xf32>
    %78 = vector.extract_strided_slice %51 {offsets = [0, 0], sizes = [96, 1], strides = [1, 1]} : vector<96x4xi32> to vector<96x1xi32>
    %c63_i32 = arith.constant 63 : i32
    %79 = vector.broadcast %c63_i32 : i32 to vector<96x1xi32>
    %80 = arith.addi %78, %79 : vector<96x1xi32>
    %81 = vector.broadcast %80 : vector<96x1xi32> to vector<96x128xi32>
    %82 = arith.cmpi eq, %52, %81 : vector<96x128xi32>
    %83 = arith.extui %82 : vector<96x128xi1> to vector<96x128xi32>
    %84 = arith.sitofp %83 : vector<96x128xi32> to vector<96x128xf32>
    %85 = arith.addf %77, %84 : vector<96x128xf32>
    %c0_11 = arith.constant 0 : index
    %c0_12 = arith.constant 0 : index
    %86 = vector.load %arg7[%c0_11, %c0_12] : memref<128x128xf32, #tpu.memory_space<vmem>>, vector<128x128xf32>
    %cst_13 = arith.constant dense<0.000000e+00> : vector<96x128xf32>
    %87 = tpu.matmul %85, %86, %cst_13 {dimension_numbers = #tpu.dot_dimension_numbers<[1], [0], [0], [1], [0, 0, 1, 1], [], []>} : vector<96x128xf32>, vector<128x128xf32>, vector<96x128xf32> -> vector<96x128xf32>
    %88 = arith.addf %48, %87 : vector<96x128xf32>
    %c0_14 = arith.constant 0 : index
    %c0_15 = arith.constant 0 : index
    %c0_16 = arith.constant 0 : index
    %89 = vector.load %arg8[%c0_14, %c0_15, %c0_16] : memref<1x96x128xf32, #tpu.memory_space<vmem>>, vector<1x96x128xf32>
    %90 = vector.shape_cast %89 : vector<1x96x128xf32> to vector<96x128xf32>
    %91 = vector.shape_cast %88 : vector<96x128xf32> to vector<1x96x128xf32>
    tpu.vector_store %arg8[%c0_14, %c0_15, %c0_16], %91 {strides = array<i32>} : memref<1x96x128xf32, #tpu.memory_space<vmem>>, vector<1x96x128xf32>,
    return
  }
  func.func @transform_0(%arg0: i32, %arg1: i32) -> (i32, i32, i32) {
    %c0_i32 = arith.constant 0 : i32
    %c0_i32_0 = arith.constant 0 : i32
    return %arg0, %arg1, %c0_i32 : i32, i32, i32
  }
  func.func @transform_1(%arg0: i32, %arg1: i32) -> (i32, i32, i32) {
    %c0_i32 = arith.constant 0 : i32
    %c0_i32_0 = arith.constant 0 : i32
    return %arg0, %arg1, %c0_i32 : i32, i32, i32
  }
  func.func @transform_2(%arg0: i32, %arg1: i32) -> (i32, i32) {
    %c0_i32 = arith.constant 0 : i32
    %c0_i32_0 = arith.constant 0 : i32
    %c0_i32_1 = arith.constant 0 : i32
    return %c0_i32, %c0_i32_0 : i32, i32
  }
  func.func @transform_3(%arg0: i32, %arg1: i32) -> (i32, i32) {
    %c0_i32 = arith.constant 0 : i32
    %c0_i32_0 = arith.constant 0 : i32
    %c0_i32_1 = arith.constant 0 : i32
    return %c0_i32, %c0_i32_0 : i32, i32
  }
  func.func @transform_4(%arg0: i32, %arg1: i32) -> (i32, i32) {
    %c0_i32 = arith.constant 0 : i32
    %c0_i32_0 = arith.constant 0 : i32
    return %arg1, %c0_i32 : i32, i32
  }
  func.func @transform_5(%arg0: i32, %arg1: i32) -> (i32, i32) {
    %c0_i32 = arith.constant 0 : i32
    %c0_i32_0 = arith.constant 0 : i32
    %c0_i32_1 = arith.constant 0 : i32
    return %c0_i32, %c0_i32_0 : i32, i32
  }
  func.func @transform_6(%arg0: i32, %arg1: i32) -> (i32, i32, i32) {
    %c0_i32 = arith.constant 0 : i32
    %c0_i32_0 = arith.constant 0 : i32
    return %arg0, %arg1, %c0_i32 : i32, i32, i32
  }
}

</mosaic_0001>

<llo_original>
// kernel: tpu_custom_call.1
$region0: #{tpu_custom_call.1}
  #allocation0 [shape = 'u32[]', space=smem, size = 0x4, offset = 0x4, fixed_abs, tag = 'smem constant byte address 0x4 - core index']
  #allocation1 [shape = 'u32[144,128]{1,0:T(1,128)}', space=vmem, size = 0x12000, scoped, tag = 'internal scratch']
  %s0 = inlined_call_operand.vmem [shape: f32[2,96,7], index: 0, kind: input, shape index: {}]
  %s1 = inlined_call_operand.vmem [shape: f32[2,96,4], index: 1, kind: input, shape index: {}]
  %s2 = inlined_call_operand.hbm [shape: f32[7,128], index: 2, kind: input, shape index: {}]
  %s3 = inlined_call_operand.hbm [shape: f32[1,128], index: 3, kind: input, shape index: {}]
  %s4 = inlined_call_operand.hbm [shape: f32[5000,128], index: 4, kind: input, shape index: {}]
  %s5 = inlined_call_operand.hbm [shape: f32[128,128], index: 5, kind: input, shape index: {}]
  %s6 = inlined_call_operand.hbm [shape: f32[2,96,128], index: 6, kind: output, shape index: {}]
  %s7 = sld [smem:[#allocation0]]
  $region73: #{tpu_custom_call.1} parent=0
    _
  %s9 = ssub.s32 1, %s7
  %s10 = scalar_select 0, %s9, %s7
  $region1: #{tpu_custom_call.1} parent=0
    #allocation2 [shape = 'u8[4096]{0}', space=vmem, size = 0x1000, scoped, tag = 'input window, operand 2, single buffered']
    #allocation3 [shape = 's32[2]{0}', space=sflag, size = 0x8, scoped, tag = 'scoped memory for tpu_custom_call.1']
    #allocation4 [shape = 's32[2]{0}', space=sflag, size = 0x8, scoped, tag = 'scoped memory for tpu_custom_call.1']
    #allocation5 [shape = 'u8[512]{0}', space=vmem, size = 0x400, scoped, tag = 'input window, operand 3, single buffered']
    #allocation6 [shape = 's32[1]{0}', space=sflag, size = 0x4, scoped, tag = 'scoped memory for tpu_custom_call.1']
    #allocation7 [shape = 'u8[49152]{0}', space=vmem, size = 0xc000, scoped, tag = 'input window, operand 4, single buffered']
    #allocation8 [shape = 'u8[65536]{0}', space=vmem, size = 0x10000, scoped, tag = 'input window, operand 5, single buffered']
    #allocation9 [shape = 's32[1]{0}', space=sflag, size = 0x4, scoped, tag = 'scoped memory for tpu_custom_call.1']
    #allocation10 [shape = 'u8[98304]{0}', space=vmem, size = 0x18000, scoped, tag = 'output window, operand 0']
    %11 = vsyncpa [#allocation3], 0
    %12 = vsyncpa [#allocation6], 0
    %13 = vsyncpa [#allocation9], 0
    %14 = vsyncpa [#allocation4], 0
    %s15 = scalar_lea.sflag [#allocation4], 1
    %16 = vsyncpa %s15, 0
    loop: start=0, step=1, limit=4
    $region2: #{tpu_custom_call.1} parent=1 // loop_pre_header
      _
    $region3: #{tpu_custom_call.1} parent=1 // loop_header
      %s18 = sphi 0, %s22
      %p19 = scmp.ge.s32.totalorder %s18, 4
      %s25 = sphi 0, %s37
      %s26 = sphi 0, %s33
      %s27 = sphi 0, %s25
      %s28 = sphi 0, %s26
      %s29 = sphi 0, %s27
      %s30 = sphi 0, %s28
      %s42 = sphi 0, %s44
      %s45 = sphi 0, %s42
      %s46 = sphi 0, %s45
      %s62 = sphi 0, %s46
      %s70 = sphi 0, %s72
      %s73 = sphi 0, %s70
      %s74 = sphi 0, %s73
      %s90 = sphi 0, %s74
      %s94 = sphi 0, %s94
      %s96 = sphi 0, %s94
      %s97 = sphi 0, %s96
      %s111 = sphi 0, %s97
      %s115 = sphi 0, %s115
      %s117 = sphi 0, %s115
      %s118 = sphi 0, %s117
      %s132 = sphi 0, %s118
      %s138 = sphi 0, %s140
      %s141 = sphi 0, %s138
      %s142 = sphi 0, %s141
      %s158 = sphi 0, %s142
      %s162 = sphi 0, %s162
      %s164 = sphi 0, %s162
      %s165 = sphi 0, %s164
      %s179 = sphi 0, %s165
      %s187 = sphi 0, %s189
      %s190 = sphi 0, %s187
      %s191 = sphi 0, %s190
      %s207 = sphi 0, %s191
    $region4: #{tpu_custom_call.1} parent=1 // loop_header_branch
      %21 = sbr.rel (%p19) target = $region8
    $region5: #{tpu_custom_call.1} parent=1 // loop_body
      %s23 = ssub.s32 %s18, 1
      %s24 = ssub.s32 %s18, 2
      %s31 = sadd.s32 1, %s26
      %p32 = scmp.ge.s32.totalorder %s31, 1
      %s33 = scalar_select %p32, 0, %s31
      %s34 = sadd.s32 1, %s25
      %s35 = scalar_select %p32, %s34, %s25
      %p36 = scmp.ge.s32.totalorder %s35, 2
      %s37 = scalar_select %p36, 0, %s35
      %s38 = ssub.s32 %s25, %s37
      %s39 = ssub.s32 %s26, %s33
      %s40 = sor.u32 %s38, %s39
      %p41 = scmp.eq.s32.totalorder %s40, 0
      %s43 = sadd.s32 %s42, 1
      %s44 = scalar_select %p41, %s42, %s43
      %p47 = pneg %p41
      %p48 = scmp.eq.s32.totalorder %s18, 1
      %p49 = por %p47, %p48
      %p50 = scmp.ne.s32.totalorder %s42, %s45
      %p51 = scmp.eq.s32.totalorder %s18, 0
      %p52 = por %p50, %p51
      %p53 = scmp.ne.s32.totalorder %s42, %s45
      %p54 = scmp.eq.s32.totalorder %s23, 1
      %p55 = por %p53, %p54
      %p56 = scmp.ne.s32.totalorder %s45, %s46
      %p57 = scmp.eq.s32.totalorder %s23, 0
      %p58 = por %p56, %p57
      %p59 = scmp.ne.s32.totalorder %s45, %s46
      %p60 = scmp.eq.s32.totalorder %s24, 1
      %p61 = por %p59, %p60
      %p63 = scmp.ne.s32.totalorder %s46, %s62
      %p64 = scmp.eq.s32.totalorder %s24, 0
      %p65 = por %p63, %p64
      %s66 = ssub.s32 %s25, %s37
      %s67 = ssub.s32 %s26, %s33
      %s68 = sor.u32 %s66, %s67
      %p69 = scmp.eq.s32.totalorder %s68, 0
      %s71 = sadd.s32 %s70, 1
      %s72 = scalar_select %p69, %s70, %s71
      %p75 = pneg %p69
      %p76 = scmp.eq.s32.totalorder %s18, 1
      %p77 = por %p75, %p76
      %p78 = scmp.ne.s32.totalorder %s70, %s73
      %p79 = scmp.eq.s32.totalorder %s18, 0
      %p80 = por %p78, %p79
      %p81 = scmp.ne.s32.totalorder %s70, %s73
      %p82 = scmp.eq.s32.totalorder %s23, 1
      %p83 = por %p81, %p82
      %p84 = scmp.ne.s32.totalorder %s73, %s74
      %p85 = scmp.eq.s32.totalorder %s23, 0
      %p86 = por %p84, %p85
      %p87 = scmp.ne.s32.totalorder %s73, %s74
      %p88 = scmp.eq.s32.totalorder %s24, 1
      %p89 = por %p87, %p88
      %p91 = scmp.ne.s32.totalorder %s74, %s90
      %p92 = scmp.eq.s32.totalorder %s24, 0
      %p93 = por %p91, %p92
      %s95 = sadd.s32 %s94, 1
      %p98 = scmp.eq.s32.totalorder %s18, 1
      %p99 = scmp.ne.s32.totalorder %s94, %s96
      %p100 = scmp.eq.s32.totalorder %s18, 0
      %p101 = por %p99, %p100
      %p102 = scmp.ne.s32.totalorder %s94, %s96
      %p103 = scmp.eq.s32.totalorder %s23, 1
      %p104 = por %p102, %p103
      %p105 = scmp.ne.s32.totalorder %s96, %s97
      %p106 = scmp.eq.s32.totalorder %s23, 0
      %p107 = por %p105, %p106
      %p108 = scmp.ne.s32.totalorder %s96, %s97
      %p109 = scmp.eq.s32.totalorder %s24, 1
      %p110 = por %p108, %p109
      %p112 = scmp.ne.s32.totalorder %s97, %s111
      %p113 = scmp.eq.s32.totalorder %s24, 0
      %p114 = por %p112, %p113
      %s116 = sadd.s32 %s115, 1
      %p119 = scmp.eq.s32.totalorder %s18, 1
      %p120 = scmp.ne.s32.totalorder %s115, %s117
      %p121 = scmp.eq.s32.totalorder %s18, 0
      %p122 = por %p120, %p121
      %p123 = scmp.ne.s32.totalorder %s115, %s117
      %p124 = scmp.eq.s32.totalorder %s23, 1
      %p125 = por %p123, %p124
      %p126 = scmp.ne.s32.totalorder %s117, %s118
      %p127 = scmp.eq.s32.totalorder %s23, 0
      %p128 = por %p126, %p127
      %p129 = scmp.ne.s32.totalorder %s117, %s118
      %p130 = scmp.eq.s32.totalorder %s24, 1
      %p131 = por %p129, %p130
      %p133 = scmp.ne.s32.totalorder %s118, %s132
      %p134 = scmp.eq.s32.totalorder %s24, 0
      %p135 = por %p133, %p134
      %s136 = ssub.s32 %s26, %s33
      %p137 = scmp.eq.s32.totalorder %s136, 0
      %s139 = sadd.s32 %s138, 1
      %s140 = scalar_select %p137, %s138, %s139
      %p143 = pneg %p137
      %p144 = scmp.eq.s32.totalorder %s18, 1
      %p145 = por %p143, %p144
      %p146 = scmp.ne.s32.totalorder %s138, %s141
      %p147 = scmp.eq.s32.totalorder %s18, 0
      %p148 = por %p146, %p147
      %p149 = scmp.ne.s32.totalorder %s138, %s141
      %p150 = scmp.eq.s32.totalorder %s23, 1
      %p151 = por %p149, %p150
      %p152 = scmp.ne.s32.totalorder %s141, %s142
      %p153 = scmp.eq.s32.totalorder %s23, 0
      %p154 = por %p152, %p153
      %p155 = scmp.ne.s32.totalorder %s141, %s142
      %p156 = scmp.eq.s32.totalorder %s24, 1
      %p157 = por %p155, %p156
      %p159 = scmp.ne.s32.totalorder %s142, %s158
      %p160 = scmp.eq.s32.totalorder %s24, 0
      %p161 = por %p159, %p160
      %s163 = sadd.s32 %s162, 1
      %p166 = scmp.eq.s32.totalorder %s18, 1
      %p167 = scmp.ne.s32.totalorder %s162, %s164
      %p168 = scmp.eq.s32.totalorder %s18, 0
      %p169 = por %p167, %p168
      %p170 = scmp.ne.s32.totalorder %s162, %s164
      %p171 = scmp.eq.s32.totalorder %s23, 1
      %p172 = por %p170, %p171
      %p173 = scmp.ne.s32.totalorder %s164, %s165
      %p174 = scmp.eq.s32.totalorder %s23, 0
      %p175 = por %p173, %p174
      %p176 = scmp.ne.s32.totalorder %s164, %s165
      %p177 = scmp.eq.s32.totalorder %s24, 1
      %p178 = por %p176, %p177
      %p180 = scmp.ne.s32.totalorder %s165, %s179
      %p181 = scmp.eq.s32.totalorder %s24, 0
      %p182 = por %p180, %p181
      %s183 = ssub.s32 %s25, %s37
      %s184 = ssub.s32 %s26, %s33
      %s185 = sor.u32 %s183, %s184
      %p186 = scmp.eq.s32.totalorder %s185, 0
      %s188 = sadd.s32 %s187, 1
      %s189 = scalar_select %p186, %s187, %s188
      %p192 = pneg %p186
      %p193 = scmp.eq.s32.totalorder %s18, 1
      %p194 = por %p192, %p193
      %p195 = scmp.ne.s32.totalorder %s187, %s190
      %p196 = scmp.eq.s32.totalorder %s18, 0
      %p197 = por %p195, %p196
      %p198 = scmp.ne.s32.totalorder %s187, %s190
      %p199 = scmp.eq.s32.totalorder %s23, 1
      %p200 = por %p198, %p199
      %p201 = scmp.ne.s32.totalorder %s190, %s191
      %p202 = scmp.eq.s32.totalorder %s23, 0
      %p203 = por %p201, %p202
      %p204 = scmp.ne.s32.totalorder %s190, %s191
      %p205 = scmp.eq.s32.totalorder %s24, 1
      %p206 = por %p204, %p205
      %p208 = scmp.ne.s32.totalorder %s191, %s207
      %p209 = scmp.eq.s32.totalorder %s24, 0
      %p210 = por %p208, %p209
      %p211 = scmp.le.s32.totalorder 1, %s18
      %p212 = scmp.lt.s32.totalorder %s18, 3
      %p213 = pnand %p211, %p212
      %p214 = pneg %p213
      // Predicated region
      $region9: #{tpu_custom_call.1} parent=5 // pred_check
        _
      $region10: #{tpu_custom_call.1} parent=5 // pred_check_branch
        %216 = sbr.rel (%p213) target = $region12
      $region11: #{tpu_custom_call.1} parent=5 // pred_region
        %s217 = ssub.s32 %s18, 1
        // Predicated region
        $region13: #{tpu_custom_call.1} parent=11 // pred_check
          %p218 = pneg %p107
        $region14: #{tpu_custom_call.1} parent=11 // pred_check_branch
          %220 = sbr.rel (%p218) target = $region16
        $region15: #{tpu_custom_call.1} parent=11 // pred_region
          %s222 = ssub.s32 128, 128
          %223 = vsyncadd [#allocation3], %s222
          %s225 = sshll.u32 [#allocation2], 4
          %s226 = int_to_ptr.vmem [resolvable:$true] %s225
          %228 = dma.hbm_to_vmem [thread:$0]  %s2, 128, %s226, [#allocation3]
        $region16: #{tpu_custom_call.1} parent=11 // pred_fallthru
          _
        // Predicated region
        $region17: #{tpu_custom_call.1} parent=11 // pred_check
          %p229 = pneg %p128
        $region18: #{tpu_custom_call.1} parent=11 // pred_check_branch
          %231 = sbr.rel (%p229) target = $region20
        $region19: #{tpu_custom_call.1} parent=11 // pred_region
          %s233 = ssub.s32 16, 16
          %234 = vsyncadd [#allocation6], %s233
          %s236 = sshll.u32 [#allocation5], 4
          %s237 = int_to_ptr.vmem [resolvable:$true] %s236
          %239 = dma.hbm_to_vmem [thread:$0]  %s3, 16, %s237, [#allocation6]
        $region20: #{tpu_custom_call.1} parent=11 // pred_fallthru
          _
        // Predicated region
        $region21: #{tpu_custom_call.1} parent=11 // pred_check
          %p240 = pneg %p154
        $region22: #{tpu_custom_call.1} parent=11 // pred_check_branch
          %242 = sbr.rel (%p240) target = $region24
        $region23: #{tpu_custom_call.1} parent=11 // pred_region
          %s243 = smul.u32 12, %s28
          %s244 = ssub.s32 625, %s243
          %p245 = scmp.lt.s32.totalorder %s244, 12
          %s246 = scalar_select %p245, %s244, 12
          %s247 = smul.u32 128, %s246
          %s249 = ssub.s32 1536, %s247
          %250 = vsyncadd [#allocation6], %s249
          %p251 = scmp.ne.s32.totalorder 0, %s247
          %s252 = smul.addr %s243, 128
          %s253 = scalar_lea.hbm %s4, %s252
          %s254 = smul.u32 8, %s246
          %s255 = sshll.u32 [#allocation7], 4
          %s256 = int_to_ptr.vmem [resolvable:$true] %s255
          %s257 = sshll.u32 %s254, 4
          %261 = dma.hbm_to_vmem [thread:$0]  (%p251), %s253, %s257, %s256, [#allocation6], 128, 128, 8
        $region24: #{tpu_custom_call.1} parent=11 // pred_fallthru
          _
        // Predicated region
        $region25: #{tpu_custom_call.1} parent=11 // pred_check
          %p262 = pneg %p175
        $region26: #{tpu_custom_call.1} parent=11 // pred_check_branch
          %264 = sbr.rel (%p262) target = $region28
        $region27: #{tpu_custom_call.1} parent=11 // pred_region
          %s266 = ssub.s32 2048, 2048
          %267 = vsyncadd [#allocation9], %s266
          %s268 = sshll.u32 [#allocation8], 4
          %s269 = int_to_ptr.vmem [resolvable:$true] %s268
          %274 = dma.hbm_to_vmem [thread:$0]  %s5, 2048, %s269, [#allocation9], 128, 128, 8
        $region28: #{tpu_custom_call.1} parent=11 // pred_fallthru
          _
      $region12: #{tpu_custom_call.1} parent=5 // pred_fallthru
        _
      %p275 = scmp.lt.s32.totalorder %s18, 2
      // Predicated region
      $region29: #{tpu_custom_call.1} parent=5 // pred_check
        %p276 = pneg %p275
      $region30: #{tpu_custom_call.1} parent=5 // pred_check_branch
        %278 = sbr.rel (%p276) target = $region32
      $region31: #{tpu_custom_call.1} parent=5 // pred_region
        // Predicated region
        $region33: #{tpu_custom_call.1} parent=31 // pred_check
          %p279 = pneg %p52
        $region34: #{tpu_custom_call.1} parent=31 // pred_check_branch
          %281 = sbr.rel (%p279) target = $region36
        $region35: #{tpu_custom_call.1} parent=31 // pred_region
          %s282 = smul.u32 12, %s26
          %p283 = scmp.lt.s32.totalorder %s25, 1
          %s284 = scalar_select %p283, %s25, 1
          %p285 = scmp.lt.s32.totalorder %s282, 11
          %s286 = scalar_select %p285, %s282, 11
          %s287 = smul.addr %s284, 12
          %s288 = sadd.s32 %s286, %s287
          %s289 = smul.addr %s288, 8
          %s290 = scalar_lea.vmem %s0, %s289
          %s291 = smul.u32 12, %s26
        $region36: #{tpu_custom_call.1} parent=31 // pred_fallthru
          _
        // Predicated region
        $region37: #{tpu_custom_call.1} parent=31 // pred_check
          %p292 = pneg %p80
        $region38: #{tpu_custom_call.1} parent=31 // pred_check_branch
          %294 = sbr.rel (%p292) target = $region40
        $region39: #{tpu_custom_call.1} parent=31 // pred_region
          %s295 = smul.u32 12, %s26
          %p296 = scmp.lt.s32.totalorder %s25, 1
          %s297 = scalar_select %p296, %s25, 1
          %p298 = scmp.lt.s32.totalorder %s295, 11
          %s299 = scalar_select %p298, %s295, 11
          %s300 = smul.addr %s297, 12
          %s301 = sadd.s32 %s299, %s300
          %s302 = smul.addr %s301, 8
          %s303 = scalar_lea.vmem %s1, %s302
          %s304 = smul.u32 12, %s26
        $region40: #{tpu_custom_call.1} parent=31 // pred_fallthru
          _
      $region32: #{tpu_custom_call.1} parent=5 // pred_fallthru
        _
      %p305 = scmp.le.s32.totalorder 1, %s18
      %p306 = scmp.lt.s32.totalorder %s18, 3
      %p307 = pnand %p305, %p306
      %p308 = pneg %p307
      // Predicated region
      $region41: #{tpu_custom_call.1} parent=5 // pred_check
        _
      $region42: #{tpu_custom_call.1} parent=5 // pred_check_branch
        %310 = sbr.rel (%p307) target = $region44
      $region43: #{tpu_custom_call.1} parent=5 // pred_region
        %s311 = ssub.s32 %s18, 1
        // Predicated region
        $region45: #{tpu_custom_call.1} parent=43 // pred_check
          %p312 = pneg %p107
        $region46: #{tpu_custom_call.1} parent=43 // pred_check_branch
          %314 = sbr.rel (%p312) target = $region48
        $region47: #{tpu_custom_call.1} parent=43 // pred_region
          %315 = dma.done [#allocation3], 128
        $region48: #{tpu_custom_call.1} parent=43 // pred_fallthru
          _
        // Predicated region
        $region49: #{tpu_custom_call.1} parent=43 // pred_check
          %p316 = pneg %p128
        $region50: #{tpu_custom_call.1} parent=43 // pred_check_branch
          %318 = sbr.rel (%p316) target = $region52
        $region51: #{tpu_custom_call.1} parent=43 // pred_region
          %319 = dma.done [#allocation6], 16
        $region52: #{tpu_custom_call.1} parent=43 // pred_fallthru
          _
        // Predicated region
        $region53: #{tpu_custom_call.1} parent=43 // pred_check
          %p320 = pneg %p154
        $region54: #{tpu_custom_call.1} parent=43 // pred_check_branch
          %322 = sbr.rel (%p320) target = $region56
        $region55: #{tpu_custom_call.1} parent=43 // pred_region
          %323 = dma.done [#allocation6], 1536
        $region56: #{tpu_custom_call.1} parent=43 // pred_fallthru
          _
        // Predicated region
        $region57: #{tpu_custom_call.1} parent=43 // pred_check
          %p324 = pneg %p175
        $region58: #{tpu_custom_call.1} parent=43 // pred_check_branch
          %326 = sbr.rel (%p324) target = $region60
        $region59: #{tpu_custom_call.1} parent=43 // pred_region
          %327 = dma.done [#allocation9], 2048
        $region60: #{tpu_custom_call.1} parent=43 // pred_fallthru
          _
        %s328 = smul.u32 12, %s28
        %p329 = scmp.lt.s32.totalorder %s27, 1
        %s330 = scalar_select %p329, %s27, 1
        %p331 = scmp.lt.s32.totalorder %s328, 11
        %s332 = scalar_select %p331, %s328, 11
        %s333 = smul.addr %s330, 12
        %s334 = sadd.s32 %s332, %s333
        %s335 = smul.addr %s334, 8
        %s336 = scalar_lea.vmem %s0, %s335
        %p337 = pneg %p58
        %p338 = pneg %p55
        %s339 = smul.u32 12, %s28
        %p340 = scmp.lt.s32.totalorder %s27, 1
        %s341 = scalar_select %p340, %s27, 1
        %p342 = scmp.lt.s32.totalorder %s339, 11
        %s343 = scalar_select %p342, %s339, 11
        %s344 = smul.addr %s341, 12
        %s345 = sadd.s32 %s343, %s344
        %s346 = smul.addr %s345, 8
        %s347 = scalar_lea.vmem %s1, %s346
        %p348 = pneg %p86
        %p349 = pneg %p83
        %p350 = pneg %p107
        %p351 = pneg %p104
        %p352 = pneg %p128
        %p353 = pneg %p125
        %p354 = pneg %p154
        %p355 = pneg %p151
        %p356 = pneg %p175
        %p357 = pneg %p172
        %p358 = pneg %p203
        %p359 = pneg %p200
        %s360 = sand.u32 %s190, 1
        %s361 = scalar_lea.sflag [#allocation4], %s360
        %s362 = sand.u32 %s190, 1
        %s363 = smul.addr %s362, 96
        %s364 = scalar_lea.vmem [#allocation10], %s363
        %s365 = smul.u32 12, %s28
        %p366 = scmp.lt.s32.totalorder %s27, 1
        %s367 = scalar_select %p366, %s27, 1
        %p368 = scmp.lt.s32.totalorder %s365, 11
        %s369 = scalar_select %p368, %s365, 11
        %s370 = smul.addr %s367, 12
        %s371 = sadd.s32 %s369, %s370
        %s372 = smul.addr %s371, 8
        %s373 = scalar_lea.vmem %s0, %s372
        %s374 = smul.u32 12, %s28
        %s375 = smul.u32 12, %s28
        %p376 = scmp.lt.s32.totalorder %s27, 1
        %s377 = scalar_select %p376, %s27, 1
        %p378 = scmp.lt.s32.totalorder %s375, 11
        %s379 = scalar_select %p378, %s375, 11
        %s380 = smul.addr %s377, 12
        %s381 = sadd.s32 %s379, %s380
        %s382 = smul.addr %s381, 8
        %s383 = scalar_lea.vmem %s1, %s382
        %s384 = smul.u32 12, %s28
        %s385 = smul.u32 12, %s28
        %s386 = ssub.s32 625, %s385
        %p387 = scmp.lt.s32.totalorder %s386, 12
        %s388 = scalar_select %p387, %s386, 12
        %s389 = smul.u32 128, %s388
        %s390 = smul.u32 12, %s28
        %v391 = vld [vmem:[%s373] sm:$0xff]
        %v392 = vld [vmem:[%s373 + $0x8] sm:$0xff]
        %v393 = vld [vmem:[%s373 + $0x10] sm:$0xff]
        %v394 = vld [vmem:[%s373 + $0x18] sm:$0xff]
        %v395 = vld [vmem:[%s373 + $0x20] sm:$0xff]
        %v396 = vld [vmem:[%s373 + $0x28] sm:$0xff]
        %v397 = vld [vmem:[%s373 + $0x30] sm:$0xff]
        %v398 = vld [vmem:[%s373 + $0x38] sm:$0xff]
        %v399 = vld [vmem:[%s373 + $0x40] sm:$0xff]
        %v400 = vld [vmem:[%s373 + $0x48] sm:$0xff]
        %v401 = vld [vmem:[%s373 + $0x50] sm:$0xff]
        %v402 = vld [vmem:[%s373 + $0x58] sm:$0xff]
        %v403 = vld [vmem:[#allocation2] sm:$0x7f]
        %v404 = vld [vmem:[#allocation7] sm:$0xff]
        %v405 = vld [vmem:[#allocation7 + $0x8] sm:$0xff]
        %v406 = vld [vmem:[#allocation7 + $0x10] sm:$0xff]
        %v407 = vld [vmem:[#allocation7 + $0x18] sm:$0xff]
        %v408 = vld [vmem:[#allocation7 + $0x20] sm:$0xff]
        %v409 = vld [vmem:[#allocation7 + $0x28] sm:$0xff]
        %v410 = vld [vmem:[#allocation7 + $0x30] sm:$0xff]
        %v411 = vld [vmem:[#allocation7 + $0x38] sm:$0xff]
        %v412 = vld [vmem:[#allocation7 + $0x40] sm:$0xff]
        %v413 = vld [vmem:[#allocation7 + $0x48] sm:$0xff]
        %v414 = vld [vmem:[#allocation7 + $0x50] sm:$0xff]
        %v415 = vld [vmem:[#allocation7 + $0x58] sm:$0xff]
        %v416 = vld [vmem:[#allocation5] sm:$0x1]
        %v418 = vlaneseq
        %v419 = vshrl.u32 %v418, 7
        %v420 = vsub.s32 0, %v419
        %v421 = vrot.slane %v416, %v420
        %v423 = vadd.f32 %v404, %v421
        %v424 = vadd.f32 %v405, %v421
        %v425 = vadd.f32 %v406, %v421
        %v426 = vadd.f32 %v407, %v421
        %v427 = vadd.f32 %v408, %v421
        %v428 = vadd.f32 %v409, %v421
        %v429 = vadd.f32 %v410, %v421
        %v430 = vadd.f32 %v411, %v421
        %v431 = vadd.f32 %v412, %v421
        %v432 = vadd.f32 %v413, %v421
        %v433 = vadd.f32 %v414, %v421
        %v434 = vadd.f32 %v415, %v421
        %436 = vset.pattern.permute.xlu0 0
        %437 = vperm.xlu0 %436, %v391
        %v438 = vpop.permute.xlu0 %437
        %441 = vset.pattern.permute.xlu0 0
        %442 = vperm.xlu0 %441, %v392
        %v443 = vpop.permute.xlu0 %442
        %446 = vset.pattern.permute.xlu0 0
        %447 = vperm.xlu0 %446, %v393
        %v448 = vpop.permute.xlu0 %447
        %451 = vset.pattern.permute.xlu0 0
        %452 = vperm.xlu0 %451, %v394
        %v453 = vpop.permute.xlu0 %452
        %456 = vset.pattern.permute.xlu0 0
        %457 = vperm.xlu0 %456, %v395
        %v458 = vpop.permute.xlu0 %457
        %461 = vset.pattern.permute.xlu0 0
        %462 = vperm.xlu0 %461, %v396
        %v463 = vpop.permute.xlu0 %462
        %466 = vset.pattern.permute.xlu0 0
        %467 = vperm.xlu0 %466, %v397
        %v468 = vpop.permute.xlu0 %467
        %471 = vset.pattern.permute.xlu0 0
        %472 = vperm.xlu0 %471, %v398
        %v473 = vpop.permute.xlu0 %472
        %476 = vset.pattern.permute.xlu0 0
        %477 = vperm.xlu0 %476, %v399
        %v478 = vpop.permute.xlu0 %477
        %481 = vset.pattern.permute.xlu0 0
        %482 = vperm.xlu0 %481, %v400
        %v483 = vpop.permute.xlu0 %482
        %486 = vset.pattern.permute.xlu0 0
        %487 = vperm.xlu0 %486, %v401
        %v488 = vpop.permute.xlu0 %487
        %491 = vset.pattern.permute.xlu0 0
        %492 = vperm.xlu0 %491, %v402
        %v493 = vpop.permute.xlu0 %492
        %v495 = vlaneseq
        %v496 = vshrl.u32 %v495, 7
        %v497 = vsub.s32 0, %v496
        %v498 = vrot.slane %v403, %v497
        %v499 = vmul.f32 %v438, %v498
        %v500 = vmul.f32 %v443, %v498
        %v501 = vmul.f32 %v448, %v498
        %v502 = vmul.f32 %v453, %v498
        %v503 = vmul.f32 %v458, %v498
        %v504 = vmul.f32 %v463, %v498
        %v505 = vmul.f32 %v468, %v498
        %v506 = vmul.f32 %v473, %v498
        %v507 = vmul.f32 %v478, %v498
        %v508 = vmul.f32 %v483, %v498
        %v509 = vmul.f32 %v488, %v498
        %v510 = vmul.f32 %v493, %v498
        %v511 = vadd.f32 %v423, %v499
        %v512 = vadd.f32 %v424, %v500
        %v513 = vadd.f32 %v425, %v501
        %v514 = vadd.f32 %v426, %v502
        %v515 = vadd.f32 %v427, %v503
        %v516 = vadd.f32 %v428, %v504
        %v517 = vadd.f32 %v429, %v505
        %v518 = vadd.f32 %v430, %v506
        %v519 = vadd.f32 %v431, %v507
        %v520 = vadd.f32 %v432, %v508
        %v521 = vadd.f32 %v433, %v509
        %v522 = vadd.f32 %v434, %v510
        %523 = vset.pattern.permute.xlu0 1
        %524 = vperm.xlu0 %523, %v391
        %v525 = vpop.permute.xlu0 %524
        %527 = vset.pattern.permute.xlu0 1
        %528 = vperm.xlu0 %527, %v392
        %v529 = vpop.permute.xlu0 %528
        %531 = vset.pattern.permute.xlu0 1
        %532 = vperm.xlu0 %531, %v393
        %v533 = vpop.permute.xlu0 %532
        %535 = vset.pattern.permute.xlu0 1
        %536 = vperm.xlu0 %535, %v394
        %v537 = vpop.permute.xlu0 %536
        %539 = vset.pattern.permute.xlu0 1
        %540 = vperm.xlu0 %539, %v395
        %v541 = vpop.permute.xlu0 %540
        %543 = vset.pattern.permute.xlu0 1
        %544 = vperm.xlu0 %543, %v396
        %v545 = vpop.permute.xlu0 %544
        %547 = vset.pattern.permute.xlu0 1
        %548 = vperm.xlu0 %547, %v397
        %v549 = vpop.permute.xlu0 %548
        %551 = vset.pattern.permute.xlu0 1
        %552 = vperm.xlu0 %551, %v398
        %v553 = vpop.permute.xlu0 %552
        %555 = vset.pattern.permute.xlu0 1
        %556 = vperm.xlu0 %555, %v399
        %v557 = vpop.permute.xlu0 %556
        %559 = vset.pattern.permute.xlu0 1
        %560 = vperm.xlu0 %559, %v400
        %v561 = vpop.permute.xlu0 %560
        %563 = vset.pattern.permute.xlu0 1
        %564 = vperm.xlu0 %563, %v401
        %v565 = vpop.permute.xlu0 %564
        %567 = vset.pattern.permute.xlu0 1
        %568 = vperm.xlu0 %567, %v402
        %v569 = vpop.permute.xlu0 %568
        %v571 = vlaneseq
        %v572 = vshrl.u32 %v571, 7
        %v573 = vsub.s32 1, %v572
        %v574 = vrot.slane %v403, %v573
        %v575 = vmul.f32 %v525, %v574
        %v576 = vmul.f32 %v529, %v574
        %v577 = vmul.f32 %v533, %v574
        %v578 = vmul.f32 %v537, %v574
        %v579 = vmul.f32 %v541, %v574
        %v580 = vmul.f32 %v545, %v574
        %v581 = vmul.f32 %v549, %v574
        %v582 = vmul.f32 %v553, %v574
        %v583 = vmul.f32 %v557, %v574
        %v584 = vmul.f32 %v561, %v574
        %v585 = vmul.f32 %v565, %v574
        %v586 = vmul.f32 %v569, %v574
        %v587 = vadd.f32 %v511, %v575
        %v588 = vadd.f32 %v512, %v576
        %v589 = vadd.f32 %v513, %v577
        %v590 = vadd.f32 %v514, %v578
        %v591 = vadd.f32 %v515, %v579
        %v592 = vadd.f32 %v516, %v580
        %v593 = vadd.f32 %v517, %v581
        %v594 = vadd.f32 %v518, %v582
        %v595 = vadd.f32 %v519, %v583
        %v596 = vadd.f32 %v520, %v584
        %v597 = vadd.f32 %v521, %v585
        %v598 = vadd.f32 %v522, %v586
        %599 = vset.pattern.permute.xlu0 2
        %600 = vperm.xlu0 %599, %v391
        %v601 = vpop.permute.xlu0 %600
        %603 = vset.pattern.permute.xlu0 2
        %604 = vperm.xlu0 %603, %v392
        %v605 = vpop.permute.xlu0 %604
        %607 = vset.pattern.permute.xlu0 2
        %608 = vperm.xlu0 %607, %v393
        %v609 = vpop.permute.xlu0 %608
        %611 = vset.pattern.permute.xlu0 2
        %612 = vperm.xlu0 %611, %v394
        %v613 = vpop.permute.xlu0 %612
        %615 = vset.pattern.permute.xlu0 2
        %616 = vperm.xlu0 %615, %v395
        %v617 = vpop.permute.xlu0 %616
        %619 = vset.pattern.permute.xlu0 2
        %620 = vperm.xlu0 %619, %v396
        %v621 = vpop.permute.xlu0 %620
        %623 = vset.pattern.permute.xlu0 2
        %624 = vperm.xlu0 %623, %v397
        %v625 = vpop.permute.xlu0 %624
        %627 = vset.pattern.permute.xlu0 2
        %628 = vperm.xlu0 %627, %v398
        %v629 = vpop.permute.xlu0 %628
        %631 = vset.pattern.permute.xlu0 2
        %632 = vperm.xlu0 %631, %v399
        %v633 = vpop.permute.xlu0 %632
        %635 = vset.pattern.permute.xlu0 2
        %636 = vperm.xlu0 %635, %v400
        %v637 = vpop.permute.xlu0 %636
        %639 = vset.pattern.permute.xlu0 2
        %640 = vperm.xlu0 %639, %v401
        %v641 = vpop.permute.xlu0 %640
        %643 = vset.pattern.permute.xlu0 2
        %644 = vperm.xlu0 %643, %v402
        %v645 = vpop.permute.xlu0 %644
        %v647 = vlaneseq
        %v648 = vshrl.u32 %v647, 7
        %v649 = vsub.s32 2, %v648
        %v650 = vrot.slane %v403, %v649
        %v651 = vmul.f32 %v601, %v650
        %v652 = vmul.f32 %v605, %v650
        %v653 = vmul.f32 %v609, %v650
        %v654 = vmul.f32 %v613, %v650
        %v655 = vmul.f32 %v617, %v650
        %v656 = vmul.f32 %v621, %v650
        %v657 = vmul.f32 %v625, %v650
        %v658 = vmul.f32 %v629, %v650
        %v659 = vmul.f32 %v633, %v650
        %v660 = vmul.f32 %v637, %v650
        %v661 = vmul.f32 %v641, %v650
        %v662 = vmul.f32 %v645, %v650
        %v663 = vadd.f32 %v587, %v651
        %v664 = vadd.f32 %v588, %v652
        %v665 = vadd.f32 %v589, %v653
        %v666 = vadd.f32 %v590, %v654
        %v667 = vadd.f32 %v591, %v655
        %v668 = vadd.f32 %v592, %v656
        %v669 = vadd.f32 %v593, %v657
        %v670 = vadd.f32 %v594, %v658
        %v671 = vadd.f32 %v595, %v659
        %v672 = vadd.f32 %v596, %v660
        %v673 = vadd.f32 %v597, %v661
        %v674 = vadd.f32 %v598, %v662
        %675 = vset.pattern.permute.xlu0 3
        %676 = vperm.xlu0 %675, %v391
        %v677 = vpop.permute.xlu0 %676
        %679 = vset.pattern.permute.xlu0 3
        %680 = vperm.xlu0 %679, %v392
        %v681 = vpop.permute.xlu0 %680
        %683 = vset.pattern.permute.xlu0 3
        %684 = vperm.xlu0 %683, %v393
        %v685 = vpop.permute.xlu0 %684
        %687 = vset.pattern.permute.xlu0 3
        %688 = vperm.xlu0 %687, %v394
        %v689 = vpop.permute.xlu0 %688
        %691 = vset.pattern.permute.xlu0 3
        %692 = vperm.xlu0 %691, %v395
        %v693 = vpop.permute.xlu0 %692
        %695 = vset.pattern.permute.xlu0 3
        %696 = vperm.xlu0 %695, %v396
        %v697 = vpop.permute.xlu0 %696
        %699 = vset.pattern.permute.xlu0 3
        %700 = vperm.xlu0 %699, %v397
        %v701 = vpop.permute.xlu0 %700
        %703 = vset.pattern.permute.xlu0 3
        %704 = vperm.xlu0 %703, %v398
        %v705 = vpop.permute.xlu0 %704
        %707 = vset.pattern.permute.xlu0 3
        %708 = vperm.xlu0 %707, %v399
        %v709 = vpop.permute.xlu0 %708
        %711 = vset.pattern.permute.xlu0 3
        %712 = vperm.xlu0 %711, %v400
        %v713 = vpop.permute.xlu0 %712
        %715 = vset.pattern.permute.xlu0 3
        %716 = vperm.xlu0 %715, %v401
        %v717 = vpop.permute.xlu0 %716
        %719 = vset.pattern.permute.xlu0 3
        %720 = vperm.xlu0 %719, %v402
        %v721 = vpop.permute.xlu0 %720
        %v723 = vlaneseq
        %v724 = vshrl.u32 %v723, 7
        %v725 = vsub.s32 3, %v724
        %v726 = vrot.slane %v403, %v725
        %v727 = vmul.f32 %v677, %v726
        %v728 = vmul.f32 %v681, %v726
        %v729 = vmul.f32 %v685, %v726
        %v730 = vmul.f32 %v689, %v726
        %v731 = vmul.f32 %v693, %v726
        %v732 = vmul.f32 %v697, %v726
        %v733 = vmul.f32 %v701, %v726
        %v734 = vmul.f32 %v705, %v726
        %v735 = vmul.f32 %v709, %v726
        %v736 = vmul.f32 %v713, %v726
        %v737 = vmul.f32 %v717, %v726
        %v738 = vmul.f32 %v721, %v726
        %v739 = vadd.f32 %v663, %v727
        %v740 = vadd.f32 %v664, %v728
        %v741 = vadd.f32 %v665, %v729
        %v742 = vadd.f32 %v666, %v730
        %v743 = vadd.f32 %v667, %v731
        %v744 = vadd.f32 %v668, %v732
        %v745 = vadd.f32 %v669, %v733
        %v746 = vadd.f32 %v670, %v734
        %v747 = vadd.f32 %v671, %v735
        %v748 = vadd.f32 %v672, %v736
        %v749 = vadd.f32 %v673, %v737
        %v750 = vadd.f32 %v674, %v738
        %751 = vset.pattern.permute.xlu0 4
        %752 = vperm.xlu0 %751, %v391
        %v753 = vpop.permute.xlu0 %752
        %755 = vset.pattern.permute.xlu0 4
        %756 = vperm.xlu0 %755, %v392
        %v757 = vpop.permute.xlu0 %756
        %759 = vset.pattern.permute.xlu0 4
        %760 = vperm.xlu0 %759, %v393
        %v761 = vpop.permute.xlu0 %760
        %763 = vset.pattern.permute.xlu0 4
        %764 = vperm.xlu0 %763, %v394
        %v765 = vpop.permute.xlu0 %764
        %767 = vset.pattern.permute.xlu0 4
        %768 = vperm.xlu0 %767, %v395
        %v769 = vpop.permute.xlu0 %768
        %771 = vset.pattern.permute.xlu0 4
        %772 = vperm.xlu0 %771, %v396
        %v773 = vpop.permute.xlu0 %772
        %775 = vset.pattern.permute.xlu0 4
        %776 = vperm.xlu0 %775, %v397
        %v777 = vpop.permute.xlu0 %776
        %779 = vset.pattern.permute.xlu0 4
        %780 = vperm.xlu0 %779, %v398
        %v781 = vpop.permute.xlu0 %780
        %783 = vset.pattern.permute.xlu0 4
        %784 = vperm.xlu0 %783, %v399
        %v785 = vpop.permute.xlu0 %784
        %787 = vset.pattern.permute.xlu0 4
        %788 = vperm.xlu0 %787, %v400
        %v789 = vpop.permute.xlu0 %788
        %791 = vset.pattern.permute.xlu0 4
        %792 = vperm.xlu0 %791, %v401
        %v793 = vpop.permute.xlu0 %792
        %795 = vset.pattern.permute.xlu0 4
        %796 = vperm.xlu0 %795, %v402
        %v797 = vpop.permute.xlu0 %796
        %v799 = vlaneseq
        %v800 = vshrl.u32 %v799, 7
        %v801 = vsub.s32 4, %v800
        %v802 = vrot.slane %v403, %v801
        %v803 = vmul.f32 %v753, %v802
        %v804 = vmul.f32 %v757, %v802
        %v805 = vmul.f32 %v761, %v802
        %v806 = vmul.f32 %v765, %v802
        %v807 = vmul.f32 %v769, %v802
        %v808 = vmul.f32 %v773, %v802
        %v809 = vmul.f32 %v777, %v802
        %v810 = vmul.f32 %v781, %v802
        %v811 = vmul.f32 %v785, %v802
        %v812 = vmul.f32 %v789, %v802
        %v813 = vmul.f32 %v793, %v802
        %v814 = vmul.f32 %v797, %v802
        %v815 = vadd.f32 %v739, %v803
        %v816 = vadd.f32 %v740, %v804
        %v817 = vadd.f32 %v741, %v805
        %v818 = vadd.f32 %v742, %v806
        %v819 = vadd.f32 %v743, %v807
        %v820 = vadd.f32 %v744, %v808
        %v821 = vadd.f32 %v745, %v809
        %v822 = vadd.f32 %v746, %v810
        %v823 = vadd.f32 %v747, %v811
        %v824 = vadd.f32 %v748, %v812
        %v825 = vadd.f32 %v749, %v813
        %v826 = vadd.f32 %v750, %v814
        %827 = vset.pattern.permute.xlu0 5
        %828 = vperm.xlu0 %827, %v391
        %v829 = vpop.permute.xlu0 %828
        %831 = vset.pattern.permute.xlu0 5
        %832 = vperm.xlu0 %831, %v392
        %v833 = vpop.permute.xlu0 %832
        %835 = vset.pattern.permute.xlu0 5
        %836 = vperm.xlu0 %835, %v393
        %v837 = vpop.permute.xlu0 %836
        %839 = vset.pattern.permute.xlu0 5
        %840 = vperm.xlu0 %839, %v394
        %v841 = vpop.permute.xlu0 %840
        %843 = vset.pattern.permute.xlu0 5
        %844 = vperm.xlu0 %843, %v395
        %v845 = vpop.permute.xlu0 %844
        %847 = vset.pattern.permute.xlu0 5
        %848 = vperm.xlu0 %847, %v396
        %v849 = vpop.permute.xlu0 %848
        %851 = vset.pattern.permute.xlu0 5
        %852 = vperm.xlu0 %851, %v397
        %v853 = vpop.permute.xlu0 %852
        %855 = vset.pattern.permute.xlu0 5
        %856 = vperm.xlu0 %855, %v398
        %v857 = vpop.permute.xlu0 %856
        %859 = vset.pattern.permute.xlu0 5
        %860 = vperm.xlu0 %859, %v399
        %v861 = vpop.permute.xlu0 %860
        %863 = vset.pattern.permute.xlu0 5
        %864 = vperm.xlu0 %863, %v400
        %v865 = vpop.permute.xlu0 %864
        %867 = vset.pattern.permute.xlu0 5
        %868 = vperm.xlu0 %867, %v401
        %v869 = vpop.permute.xlu0 %868
        %871 = vset.pattern.permute.xlu0 5
        %872 = vperm.xlu0 %871, %v402
        %v873 = vpop.permute.xlu0 %872
        %v875 = vlaneseq
        %v876 = vshrl.u32 %v875, 7
        %v877 = vsub.s32 5, %v876
        %v878 = vrot.slane %v403, %v877
        %v879 = vmul.f32 %v829, %v878
        %v880 = vmul.f32 %v833, %v878
        %v881 = vmul.f32 %v837, %v878
        %v882 = vmul.f32 %v841, %v878
        %v883 = vmul.f32 %v845, %v878
        %v884 = vmul.f32 %v849, %v878
        %v885 = vmul.f32 %v853, %v878
        %v886 = vmul.f32 %v857, %v878
        %v887 = vmul.f32 %v861, %v878
        %v888 = vmul.f32 %v865, %v878
        %v889 = vmul.f32 %v869, %v878
        %v890 = vmul.f32 %v873, %v878
        %v891 = vadd.f32 %v815, %v879
        %v892 = vadd.f32 %v816, %v880
        %v893 = vadd.f32 %v817, %v881
        %v894 = vadd.f32 %v818, %v882
        %v895 = vadd.f32 %v819, %v883
        %v896 = vadd.f32 %v820, %v884
        %v897 = vadd.f32 %v821, %v885
        %v898 = vadd.f32 %v822, %v886
        %v899 = vadd.f32 %v823, %v887
        %v900 = vadd.f32 %v824, %v888
        %v901 = vadd.f32 %v825, %v889
        %v902 = vadd.f32 %v826, %v890
        %903 = vset.pattern.permute.xlu0 6
        %904 = vperm.xlu0 %903, %v391
        %v905 = vpop.permute.xlu0 %904
        %907 = vset.pattern.permute.xlu0 6
        %908 = vperm.xlu0 %907, %v392
        %v909 = vpop.permute.xlu0 %908
        %911 = vset.pattern.permute.xlu0 6
        %912 = vperm.xlu0 %911, %v393
        %v913 = vpop.permute.xlu0 %912
        %915 = vset.pattern.permute.xlu0 6
        %916 = vperm.xlu0 %915, %v394
        %v917 = vpop.permute.xlu0 %916
        %919 = vset.pattern.permute.xlu0 6
        %920 = vperm.xlu0 %919, %v395
        %v921 = vpop.permute.xlu0 %920
        %923 = vset.pattern.permute.xlu0 6
        %924 = vperm.xlu0 %923, %v396
        %v925 = vpop.permute.xlu0 %924
        %927 = vset.pattern.permute.xlu0 6
        %928 = vperm.xlu0 %927, %v397
        %v929 = vpop.permute.xlu0 %928
        %931 = vset.pattern.permute.xlu0 6
        %932 = vperm.xlu0 %931, %v398
        %v933 = vpop.permute.xlu0 %932
        %935 = vset.pattern.permute.xlu0 6
        %936 = vperm.xlu0 %935, %v399
        %v937 = vpop.permute.xlu0 %936
        %939 = vset.pattern.permute.xlu0 6
        %940 = vperm.xlu0 %939, %v400
        %v941 = vpop.permute.xlu0 %940
        %943 = vset.pattern.permute.xlu0 6
        %944 = vperm.xlu0 %943, %v401
        %v945 = vpop.permute.xlu0 %944
        %947 = vset.pattern.permute.xlu0 6
        %948 = vperm.xlu0 %947, %v402
        %v949 = vpop.permute.xlu0 %948
        %v951 = vlaneseq
        %v952 = vshrl.u32 %v951, 7
        %v953 = vsub.s32 6, %v952
        %v954 = vrot.slane %v403, %v953
        %v955 = vmul.f32 %v905, %v954
        %v956 = vmul.f32 %v909, %v954
        %v957 = vmul.f32 %v913, %v954
        %v958 = vmul.f32 %v917, %v954
        %v959 = vmul.f32 %v921, %v954
        %v960 = vmul.f32 %v925, %v954
        %v961 = vmul.f32 %v929, %v954
        %v962 = vmul.f32 %v933, %v954
        %v963 = vmul.f32 %v937, %v954
        %v964 = vmul.f32 %v941, %v954
        %v965 = vmul.f32 %v945, %v954
        %v966 = vmul.f32 %v949, %v954
        %v967 = vadd.f32 %v891, %v955
        %v968 = vadd.f32 %v892, %v956
        %v969 = vadd.f32 %v893, %v957
        %v970 = vadd.f32 %v894, %v958
        %v971 = vadd.f32 %v895, %v959
        %v972 = vadd.f32 %v896, %v960
        %v973 = vadd.f32 %v897, %v961
        %v974 = vadd.f32 %v898, %v962
        %v975 = vadd.f32 %v899, %v963
        %v976 = vadd.f32 %v900, %v964
        %v977 = vadd.f32 %v901, %v965
        %v978 = vadd.f32 %v902, %v966
        %v979 = vld [vmem:[%s383] sm:$0xff]
        %v980 = vld [vmem:[%s383 + $0x8] sm:$0xff]
        %v981 = vld [vmem:[%s383 + $0x10] sm:$0xff]
        %v982 = vld [vmem:[%s383 + $0x18] sm:$0xff]
        %v983 = vld [vmem:[%s383 + $0x20] sm:$0xff]
        %v984 = vld [vmem:[%s383 + $0x28] sm:$0xff]
        %v985 = vld [vmem:[%s383 + $0x30] sm:$0xff]
        %v986 = vld [vmem:[%s383 + $0x38] sm:$0xff]
        %v987 = vld [vmem:[%s383 + $0x40] sm:$0xff]
        %v988 = vld [vmem:[%s383 + $0x48] sm:$0xff]
        %v989 = vld [vmem:[%s383 + $0x50] sm:$0xff]
        %v990 = vld [vmem:[%s383 + $0x58] sm:$0xff]
        %v991 = vcvt.f32.s32.to.zero.pseudo %v979
        %v992 = vcvt.f32.s32.to.zero.pseudo %v980
        %v993 = vcvt.f32.s32.to.zero.pseudo %v981
        %v994 = vcvt.f32.s32.to.zero.pseudo %v982
        %v995 = vcvt.f32.s32.to.zero.pseudo %v983
        %v996 = vcvt.f32.s32.to.zero.pseudo %v984
        %v997 = vcvt.f32.s32.to.zero.pseudo %v985
        %v998 = vcvt.f32.s32.to.zero.pseudo %v986
        %v999 = vcvt.f32.s32.to.zero.pseudo %v987
        %v1000 = vcvt.f32.s32.to.zero.pseudo %v988
        %v1001 = vcvt.f32.s32.to.zero.pseudo %v989
        %v1002 = vcvt.f32.s32.to.zero.pseudo %v990
        %v1003 = vlaneseq
        %v1004 = vand.u32 %v1003, 127
        %1005 = vset.pattern.permute.xlu0 3
        %1006 = vperm.xlu0 %1005, %v991
        %v1007 = vpop.permute.xlu0 %1006
        %1008 = vset.pattern.permute.xlu0 3
        %1009 = vperm.xlu0 %1008, %v992
        %v1010 = vpop.permute.xlu0 %1009
        %1011 = vset.pattern.permute.xlu0 3
        %1012 = vperm.xlu0 %1011, %v993
        %v1013 = vpop.permute.xlu0 %1012
        %1014 = vset.pattern.permute.xlu0 3
        %1015 = vperm.xlu0 %1014, %v994
        %v1016 = vpop.permute.xlu0 %1015
        %1017 = vset.pattern.permute.xlu0 3
        %1018 = vperm.xlu0 %1017, %v995
        %v1019 = vpop.permute.xlu0 %1018
        %1020 = vset.pattern.permute.xlu0 3
        %1021 = vperm.xlu0 %1020, %v996
        %v1022 = vpop.permute.xlu0 %1021
        %1023 = vset.pattern.permute.xlu0 3
        %1024 = vperm.xlu0 %1023, %v997
        %v1025 = vpop.permute.xlu0 %1024
        %1026 = vset.pattern.permute.xlu0 3
        %1027 = vperm.xlu0 %1026, %v998
        %v1028 = vpop.permute.xlu0 %1027
        %1029 = vset.pattern.permute.xlu0 3
        %1030 = vperm.xlu0 %1029, %v999
        %v1031 = vpop.permute.xlu0 %1030
        %1032 = vset.pattern.permute.xlu0 3
        %1033 = vperm.xlu0 %1032, %v1000
        %v1034 = vpop.permute.xlu0 %1033
        %1035 = vset.pattern.permute.xlu0 3
        %1036 = vperm.xlu0 %1035, %v1001
        %v1037 = vpop.permute.xlu0 %1036
        %1038 = vset.pattern.permute.xlu0 3
        %1039 = vperm.xlu0 %1038, %v1002
        %v1040 = vpop.permute.xlu0 %1039
        %vm1041 = vcmp.eq.s32.totalorder %v1004, %v1007
        %vm1042 = vcmp.eq.s32.totalorder %v1004, %v1010
        %vm1043 = vcmp.eq.s32.totalorder %v1004, %v1013
        %vm1044 = vcmp.eq.s32.totalorder %v1004, %v1016
        %vm1045 = vcmp.eq.s32.totalorder %v1004, %v1019
        %vm1046 = vcmp.eq.s32.totalorder %v1004, %v1022
        %vm1047 = vcmp.eq.s32.totalorder %v1004, %v1025
        %vm1048 = vcmp.eq.s32.totalorder %v1004, %v1028
        %vm1049 = vcmp.eq.s32.totalorder %v1004, %v1031
        %vm1050 = vcmp.eq.s32.totalorder %v1004, %v1034
        %vm1051 = vcmp.eq.s32.totalorder %v1004, %v1037
        %vm1052 = vcmp.eq.s32.totalorder %v1004, %v1040
        %v1053 = vsel %vm1041, 1, 0
        %v1054 = vsel %vm1042, 1, 0
        %v1055 = vsel %vm1043, 1, 0
        %v1056 = vsel %vm1044, 1, 0
        %v1057 = vsel %vm1045, 1, 0
        %v1058 = vsel %vm1046, 1, 0
        %v1059 = vsel %vm1047, 1, 0
        %v1060 = vsel %vm1048, 1, 0
        %v1061 = vsel %vm1049, 1, 0
        %v1062 = vsel %vm1050, 1, 0
        %v1063 = vsel %vm1051, 1, 0
        %v1064 = vsel %vm1052, 1, 0
        %v1065 = vcvt.s32.f32 %v1053
        %v1066 = vcvt.s32.f32 %v1054
        %v1067 = vcvt.s32.f32 %v1055
        %v1068 = vcvt.s32.f32 %v1056
        %v1069 = vcvt.s32.f32 %v1057
        %v1070 = vcvt.s32.f32 %v1058
        %v1071 = vcvt.s32.f32 %v1059
        %v1072 = vcvt.s32.f32 %v1060
        %v1073 = vcvt.s32.f32 %v1061
        %v1074 = vcvt.s32.f32 %v1062
        %v1075 = vcvt.s32.f32 %v1063
        %v1076 = vcvt.s32.f32 %v1064
        %v1077 = vadd.f32 %v1065, 0.0
        %v1078 = vadd.f32 %v1066, 0.0
        %v1079 = vadd.f32 %v1067, 0.0
        %v1080 = vadd.f32 %v1068, 0.0
        %v1081 = vadd.f32 %v1069, 0.0
        %v1082 = vadd.f32 %v1070, 0.0
        %v1083 = vadd.f32 %v1071, 0.0
        %v1084 = vadd.f32 %v1072, 0.0
        %v1085 = vadd.f32 %v1073, 0.0
        %v1086 = vadd.f32 %v1074, 0.0
        %v1087 = vadd.f32 %v1075, 0.0
        %v1088 = vadd.f32 %v1076, 0.0
        %v1089 = vadd.s32 %v991, 24
        %v1090 = vadd.s32 %v992, 24
        %v1091 = vadd.s32 %v993, 24
        %v1092 = vadd.s32 %v994, 24
        %v1093 = vadd.s32 %v995, 24
        %v1094 = vadd.s32 %v996, 24
        %v1095 = vadd.s32 %v997, 24
        %v1096 = vadd.s32 %v998, 24
        %v1097 = vadd.s32 %v999, 24
        %v1098 = vadd.s32 %v1000, 24
        %v1099 = vadd.s32 %v1001, 24
        %v1100 = vadd.s32 %v1002, 24
        %1101 = vset.pattern.permute.xlu0 2
        %1102 = vperm.xlu0 %1101, %v1089
        %v1103 = vpop.permute.xlu0 %1102
        %1104 = vset.pattern.permute.xlu0 2
        %1105 = vperm.xlu0 %1104, %v1090
        %v1106 = vpop.permute.xlu0 %1105
        %1107 = vset.pattern.permute.xlu0 2
        %1108 = vperm.xlu0 %1107, %v1091
        %v1109 = vpop.permute.xlu0 %1108
        %1110 = vset.pattern.permute.xlu0 2
        %1111 = vperm.xlu0 %1110, %v1092
        %v1112 = vpop.permute.xlu0 %1111
        %1113 = vset.pattern.permute.xlu0 2
        %1114 = vperm.xlu0 %1113, %v1093
        %v1115 = vpop.permute.xlu0 %1114
        %1116 = vset.pattern.permute.xlu0 2
        %1117 = vperm.xlu0 %1116, %v1094
        %v1118 = vpop.permute.xlu0 %1117
        %1119 = vset.pattern.permute.xlu0 2
        %1120 = vperm.xlu0 %1119, %v1095
        %v1121 = vpop.permute.xlu0 %1120
        %1122 = vset.pattern.permute.xlu0 2
        %1123 = vperm.xlu0 %1122, %v1096
        %v1124 = vpop.permute.xlu0 %1123
        %1125 = vset.pattern.permute.xlu0 2
        %1126 = vperm.xlu0 %1125, %v1097
        %v1127 = vpop.permute.xlu0 %1126
        %1128 = vset.pattern.permute.xlu0 2
        %1129 = vperm.xlu0 %1128, %v1098
        %v1130 = vpop.permute.xlu0 %1129
        %1131 = vset.pattern.permute.xlu0 2
        %1132 = vperm.xlu0 %1131, %v1099
        %v1133 = vpop.permute.xlu0 %1132
        %1134 = vset.pattern.permute.xlu0 2
        %1135 = vperm.xlu0 %1134, %v1100
        %v1136 = vpop.permute.xlu0 %1135
        %vm1137 = vcmp.eq.s32.totalorder %v1004, %v1103
        %vm1138 = vcmp.eq.s32.totalorder %v1004, %v1106
        %vm1139 = vcmp.eq.s32.totalorder %v1004, %v1109
        %vm1140 = vcmp.eq.s32.totalorder %v1004, %v1112
        %vm1141 = vcmp.eq.s32.totalorder %v1004, %v1115
        %vm1142 = vcmp.eq.s32.totalorder %v1004, %v1118
        %vm1143 = vcmp.eq.s32.totalorder %v1004, %v1121
        %vm1144 = vcmp.eq.s32.totalorder %v1004, %v1124
        %vm1145 = vcmp.eq.s32.totalorder %v1004, %v1127
        %vm1146 = vcmp.eq.s32.totalorder %v1004, %v1130
        %vm1147 = vcmp.eq.s32.totalorder %v1004, %v1133
        %vm1148 = vcmp.eq.s32.totalorder %v1004, %v1136
        %v1149 = vsel %vm1137, 1, 0
        %v1150 = vsel %vm1138, 1, 0
        %v1151 = vsel %vm1139, 1, 0
        %v1152 = vsel %vm1140, 1, 0
        %v1153 = vsel %vm1141, 1, 0
        %v1154 = vsel %vm1142, 1, 0
        %v1155 = vsel %vm1143, 1, 0
        %v1156 = vsel %vm1144, 1, 0
        %v1157 = vsel %vm1145, 1, 0
        %v1158 = vsel %vm1146, 1, 0
        %v1159 = vsel %vm1147, 1, 0
        %v1160 = vsel %vm1148, 1, 0
        %v1161 = vcvt.s32.f32 %v1149
        %v1162 = vcvt.s32.f32 %v1150
        %v1163 = vcvt.s32.f32 %v1151
        %v1164 = vcvt.s32.f32 %v1152
        %v1165 = vcvt.s32.f32 %v1153
        %v1166 = vcvt.s32.f32 %v1154
        %v1167 = vcvt.s32.f32 %v1155
        %v1168 = vcvt.s32.f32 %v1156
        %v1169 = vcvt.s32.f32 %v1157
        %v1170 = vcvt.s32.f32 %v1158
        %v1171 = vcvt.s32.f32 %v1159
        %v1172 = vcvt.s32.f32 %v1160
        %v1173 = vadd.f32 %v1077, %v1161
        %v1174 = vadd.f32 %v1078, %v1162
        %v1175 = vadd.f32 %v1079, %v1163
        %v1176 = vadd.f32 %v1080, %v1164
        %v1177 = vadd.f32 %v1081, %v1165
        %v1178 = vadd.f32 %v1082, %v1166
        %v1179 = vadd.f32 %v1083, %v1167
        %v1180 = vadd.f32 %v1084, %v1168
        %v1181 = vadd.f32 %v1085, %v1169
        %v1182 = vadd.f32 %v1086, %v1170
        %v1183 = vadd.f32 %v1087, %v1171
        %v1184 = vadd.f32 %v1088, %v1172
        %v1185 = vadd.s32 %v991, 31
        %v1186 = vadd.s32 %v992, 31
        %v1187 = vadd.s32 %v993, 31
        %v1188 = vadd.s32 %v994, 31
        %v1189 = vadd.s32 %v995, 31
        %v1190 = vadd.s32 %v996, 31
        %v1191 = vadd.s32 %v997, 31
        %v1192 = vadd.s32 %v998, 31
        %v1193 = vadd.s32 %v999, 31
        %v1194 = vadd.s32 %v1000, 31
        %v1195 = vadd.s32 %v1001, 31
        %v1196 = vadd.s32 %v1002, 31
        %1197 = vset.pattern.permute.xlu0 1
        %1198 = vperm.xlu0 %1197, %v1185
        %v1199 = vpop.permute.xlu0 %1198
        %1200 = vset.pattern.permute.xlu0 1
        %1201 = vperm.xlu0 %1200, %v1186
        %v1202 = vpop.permute.xlu0 %1201
        %1203 = vset.pattern.permute.xlu0 1
        %1204 = vperm.xlu0 %1203, %v1187
        %v1205 = vpop.permute.xlu0 %1204
        %1206 = vset.pattern.permute.xlu0 1
        %1207 = vperm.xlu0 %1206, %v1188
        %v1208 = vpop.permute.xlu0 %1207
        %1209 = vset.pattern.permute.xlu0 1
        %1210 = vperm.xlu0 %1209, %v1189
        %v1211 = vpop.permute.xlu0 %1210
        %1212 = vset.pattern.permute.xlu0 1
        %1213 = vperm.xlu0 %1212, %v1190
        %v1214 = vpop.permute.xlu0 %1213
        %1215 = vset.pattern.permute.xlu0 1
        %1216 = vperm.xlu0 %1215, %v1191
        %v1217 = vpop.permute.xlu0 %1216
        %1218 = vset.pattern.permute.xlu0 1
        %1219 = vperm.xlu0 %1218, %v1192
        %v1220 = vpop.permute.xlu0 %1219
        %1221 = vset.pattern.permute.xlu0 1
        %1222 = vperm.xlu0 %1221, %v1193
        %v1223 = vpop.permute.xlu0 %1222
        %1224 = vset.pattern.permute.xlu0 1
        %1225 = vperm.xlu0 %1224, %v1194
        %v1226 = vpop.permute.xlu0 %1225
        %1227 = vset.pattern.permute.xlu0 1
        %1228 = vperm.xlu0 %1227, %v1195
        %v1229 = vpop.permute.xlu0 %1228
        %1230 = vset.pattern.permute.xlu0 1
        %1231 = vperm.xlu0 %1230, %v1196
        %v1232 = vpop.permute.xlu0 %1231
        %vm1233 = vcmp.eq.s32.totalorder %v1004, %v1199
        %vm1234 = vcmp.eq.s32.totalorder %v1004, %v1202
        %vm1235 = vcmp.eq.s32.totalorder %v1004, %v1205
        %vm1236 = vcmp.eq.s32.totalorder %v1004, %v1208
        %vm1237 = vcmp.eq.s32.totalorder %v1004, %v1211
        %vm1238 = vcmp.eq.s32.totalorder %v1004, %v1214
        %vm1239 = vcmp.eq.s32.totalorder %v1004, %v1217
        %vm1240 = vcmp.eq.s32.totalorder %v1004, %v1220
        %vm1241 = vcmp.eq.s32.totalorder %v1004, %v1223
        %vm1242 = vcmp.eq.s32.totalorder %v1004, %v1226
        %vm1243 = vcmp.eq.s32.totalorder %v1004, %v1229
        %vm1244 = vcmp.eq.s32.totalorder %v1004, %v1232
        %v1245 = vsel %vm1233, 1, 0
        %v1246 = vsel %vm1234, 1, 0
        %v1247 = vsel %vm1235, 1, 0
        %v1248 = vsel %vm1236, 1, 0
        %v1249 = vsel %vm1237, 1, 0
        %v1250 = vsel %vm1238, 1, 0
        %v1251 = vsel %vm1239, 1, 0
        %v1252 = vsel %vm1240, 1, 0
        %v1253 = vsel %vm1241, 1, 0
        %v1254 = vsel %vm1242, 1, 0
        %v1255 = vsel %vm1243, 1, 0
        %v1256 = vsel %vm1244, 1, 0
        %v1257 = vcvt.s32.f32 %v1245
        %v1258 = vcvt.s32.f32 %v1246
        %v1259 = vcvt.s32.f32 %v1247
        %v1260 = vcvt.s32.f32 %v1248
        %v1261 = vcvt.s32.f32 %v1249
        %v1262 = vcvt.s32.f32 %v1250
        %v1263 = vcvt.s32.f32 %v1251
        %v1264 = vcvt.s32.f32 %v1252
        %v1265 = vcvt.s32.f32 %v1253
        %v1266 = vcvt.s32.f32 %v1254
        %v1267 = vcvt.s32.f32 %v1255
        %v1268 = vcvt.s32.f32 %v1256
        %v1269 = vadd.f32 %v1173, %v1257
        %v1270 = vadd.f32 %v1174, %v1258
        %v1271 = vadd.f32 %v1175, %v1259
        %v1272 = vadd.f32 %v1176, %v1260
        %v1273 = vadd.f32 %v1177, %v1261
        %v1274 = vadd.f32 %v1178, %v1262
        %v1275 = vadd.f32 %v1179, %v1263
        %v1276 = vadd.f32 %v1180, %v1264
        %v1277 = vadd.f32 %v1181, %v1265
        %v1278 = vadd.f32 %v1182, %v1266
        %v1279 = vadd.f32 %v1183, %v1267
        %v1280 = vadd.f32 %v1184, %v1268
        %v1281 = vadd.s32 %v991, 63
        %v1282 = vadd.s32 %v992, 63
        %v1283 = vadd.s32 %v993, 63
        %v1284 = vadd.s32 %v994, 63
        %v1285 = vadd.s32 %v995, 63
        %v1286 = vadd.s32 %v996, 63
        %v1287 = vadd.s32 %v997, 63
        %v1288 = vadd.s32 %v998, 63
        %v1289 = vadd.s32 %v999, 63
        %v1290 = vadd.s32 %v1000, 63
        %v1291 = vadd.s32 %v1001, 63
        %v1292 = vadd.s32 %v1002, 63
        %1293 = vset.pattern.permute.xlu0 0
        %1294 = vperm.xlu0 %1293, %v1281
        %v1295 = vpop.permute.xlu0 %1294
        %1296 = vset.pattern.permute.xlu0 0
        %1297 = vperm.xlu0 %1296, %v1282
        %v1298 = vpop.permute.xlu0 %1297
        %1299 = vset.pattern.permute.xlu0 0
        %1300 = vperm.xlu0 %1299, %v1283
        %v1301 = vpop.permute.xlu0 %1300
        %1302 = vset.pattern.permute.xlu0 0
        %1303 = vperm.xlu0 %1302, %v1284
        %v1304 = vpop.permute.xlu0 %1303
        %1305 = vset.pattern.permute.xlu0 0
        %1306 = vperm.xlu0 %1305, %v1285
        %v1307 = vpop.permute.xlu0 %1306
        %1308 = vset.pattern.permute.xlu0 0
        %1309 = vperm.xlu0 %1308, %v1286
        %v1310 = vpop.permute.xlu0 %1309
        %1311 = vset.pattern.permute.xlu0 0
        %1312 = vperm.xlu0 %1311, %v1287
        %v1313 = vpop.permute.xlu0 %1312
        %1314 = vset.pattern.permute.xlu0 0
        %1315 = vperm.xlu0 %1314, %v1288
        %v1316 = vpop.permute.xlu0 %1315
        %1317 = vset.pattern.permute.xlu0 0
        %1318 = vperm.xlu0 %1317, %v1289
        %v1319 = vpop.permute.xlu0 %1318
        %1320 = vset.pattern.permute.xlu0 0
        %1321 = vperm.xlu0 %1320, %v1290
        %v1322 = vpop.permute.xlu0 %1321
        %1323 = vset.pattern.permute.xlu0 0
        %1324 = vperm.xlu0 %1323, %v1291
        %v1325 = vpop.permute.xlu0 %1324
        %1326 = vset.pattern.permute.xlu0 0
        %1327 = vperm.xlu0 %1326, %v1292
        %v1328 = vpop.permute.xlu0 %1327
        %vm1329 = vcmp.eq.s32.totalorder %v1004, %v1295
        %vm1330 = vcmp.eq.s32.totalorder %v1004, %v1298
        %vm1331 = vcmp.eq.s32.totalorder %v1004, %v1301
        %vm1332 = vcmp.eq.s32.totalorder %v1004, %v1304
        %vm1333 = vcmp.eq.s32.totalorder %v1004, %v1307
        %vm1334 = vcmp.eq.s32.totalorder %v1004, %v1310
        %vm1335 = vcmp.eq.s32.totalorder %v1004, %v1313
        %vm1336 = vcmp.eq.s32.totalorder %v1004, %v1316
        %vm1337 = vcmp.eq.s32.totalorder %v1004, %v1319
        %vm1338 = vcmp.eq.s32.totalorder %v1004, %v1322
        %vm1339 = vcmp.eq.s32.totalorder %v1004, %v1325
        %vm1340 = vcmp.eq.s32.totalorder %v1004, %v1328
        %v1341 = vsel %vm1329, 1, 0
        %v1342 = vsel %vm1330, 1, 0
        %v1343 = vsel %vm1331, 1, 0
        %v1344 = vsel %vm1332, 1, 0
        %v1345 = vsel %vm1333, 1, 0
        %v1346 = vsel %vm1334, 1, 0
        %v1347 = vsel %vm1335, 1, 0
        %v1348 = vsel %vm1336, 1, 0
        %v1349 = vsel %vm1337, 1, 0
        %v1350 = vsel %vm1338, 1, 0
        %v1351 = vsel %vm1339, 1, 0
        %v1352 = vsel %vm1340, 1, 0
        %v1353 = vcvt.s32.f32 %v1341
        %v1354 = vcvt.s32.f32 %v1342
        %v1355 = vcvt.s32.f32 %v1343
        %v1356 = vcvt.s32.f32 %v1344
        %v1357 = vcvt.s32.f32 %v1345
        %v1358 = vcvt.s32.f32 %v1346
        %v1359 = vcvt.s32.f32 %v1347
        %v1360 = vcvt.s32.f32 %v1348
        %v1361 = vcvt.s32.f32 %v1349
        %v1362 = vcvt.s32.f32 %v1350
        %v1363 = vcvt.s32.f32 %v1351
        %v1364 = vcvt.s32.f32 %v1352
        %v1365 = vadd.f32 %v1269, %v1353
        %v1366 = vadd.f32 %v1270, %v1354
        %v1367 = vadd.f32 %v1271, %v1355
        %v1368 = vadd.f32 %v1272, %v1356
        %v1369 = vadd.f32 %v1273, %v1357
        %v1370 = vadd.f32 %v1274, %v1358
        %v1371 = vadd.f32 %v1275, %v1359
        %v1372 = vadd.f32 %v1276, %v1360
        %v1373 = vadd.f32 %v1277, %v1361
        %v1374 = vadd.f32 %v1278, %v1362
        %v1375 = vadd.f32 %v1279, %v1363
        %v1376 = vadd.f32 %v1280, %v1364
        %v1377 = vld [vmem:[#allocation8] sm:$0xff]
        %v1378 = vld [vmem:[#allocation8 + $0x8] sm:$0xff]
        %v1379 = vld [vmem:[#allocation8 + $0x10] sm:$0xff]
        %v1380 = vld [vmem:[#allocation8 + $0x18] sm:$0xff]
        %v1381 = vld [vmem:[#allocation8 + $0x20] sm:$0xff]
        %v1382 = vld [vmem:[#allocation8 + $0x28] sm:$0xff]
        %v1383 = vld [vmem:[#allocation8 + $0x30] sm:$0xff]
        %v1384 = vld [vmem:[#allocation8 + $0x38] sm:$0xff]
        %v1385 = vld [vmem:[#allocation8 + $0x40] sm:$0xff]
        %v1386 = vld [vmem:[#allocation8 + $0x48] sm:$0xff]
        %v1387 = vld [vmem:[#allocation8 + $0x50] sm:$0xff]
        %v1388 = vld [vmem:[#allocation8 + $0x58] sm:$0xff]
        %v1389 = vld [vmem:[#allocation8 + $0x60] sm:$0xff]
        %v1390 = vld [vmem:[#allocation8 + $0x68] sm:$0xff]
        %v1391 = vld [vmem:[#allocation8 + $0x70] sm:$0xff]
        %v1392 = vld [vmem:[#allocation8 + $0x78] sm:$0xff]
        %1393 = vmatprep.subr.mxu0 0.0
        %1394 = vmatpush1.msra.mxu0 %v1392
        %1395 = vmatprep.subr.mxu0 0.0
        %1396 = vmatpush1.msra.mxu0 %v1391
        %1397 = vmatprep.subr.mxu0 0.0
        %1398 = vmatpush1.msra.mxu0 %v1390
        %1399 = vmatprep.subr.mxu0 0.0
        %1400 = vmatpush1.msra.mxu0 %v1389
        %1401 = vmatprep.subr.mxu0 0.0
        %1402 = vmatpush1.msra.mxu0 %v1388
        %1403 = vmatprep.subr.mxu0 0.0
        %1404 = vmatpush1.msra.mxu0 %v1387
        %1405 = vmatprep.subr.mxu0 0.0
        %1406 = vmatpush1.msra.mxu0 %v1386
        %1407 = vmatprep.subr.mxu0 0.0
        %1408 = vmatpush1.msra.mxu0 %v1385
        %1409 = vmatprep.subr.mxu0 0.0
        %1410 = vmatpush1.msra.mxu0 %v1384
        %1411 = vmatprep.subr.mxu0 0.0
        %1412 = vmatpush1.msra.mxu0 %v1383
        %1413 = vmatprep.subr.mxu0 0.0
        %1414 = vmatpush1.msra.mxu0 %v1382
        %1415 = vmatprep.subr.mxu0 0.0
        %1416 = vmatpush1.msra.mxu0 %v1381
        %1417 = vmatprep.subr.mxu0 0.0
        %1418 = vmatpush1.msra.mxu0 %v1380
        %1419 = vmatprep.subr.mxu0 0.0
        %1420 = vmatpush1.msra.mxu0 %v1379
        %1421 = vmatprep.subr.mxu0 0.0
        %1422 = vmatpush1.msra.mxu0 %v1378
        %1423 = vmatprep.subr.mxu0 0.0
        %1424 = vmatpush1.msra.mxu0 %v1377
        %1425 = vmatprep.subr.mxu0 0.0
        %1426 = vmatpush2.msra.mxu0 0.0
        %1427 = vmatprep.subr.mxu0 0.0
        %1428 = vmatpush2.msra.mxu0 0.0
        %1429 = vmatprep.subr.mxu0 0.0
        %1430 = vmatpush2.msra.mxu0 0.0
        %1431 = vmatprep.subr.mxu0 0.0
        %1432 = vmatpush2.msra.mxu0 0.0
        %1433 = vmatprep.subr.mxu0 0.0
        %1434 = vmatpush2.msra.mxu0 0.0
        %1435 = vmatprep.subr.mxu0 0.0
        %1436 = vmatpush2.msra.mxu0 0.0
        %1437 = vmatprep.subr.mxu0 0.0
        %1438 = vmatpush2.msra.mxu0 0.0
        %1439 = vmatprep.subr.mxu0 0.0
        %1440 = vmatpush2.msra.mxu0 0.0
        %1441 = vmatprep.subr.mxu0 0.0
        %1442 = vmatpush2.msra.mxu0 0.0
        %1443 = vmatprep.subr.mxu0 0.0
        %1444 = vmatpush2.msra.mxu0 0.0
        %1445 = vmatprep.subr.mxu0 0.0
        %1446 = vmatpush2.msra.mxu0 0.0
        %1447 = vmatprep.subr.mxu0 0.0
        %1448 = vmatpush2.msra.mxu0 0.0
        %1449 = vmatprep.subr.mxu0 0.0
        %1450 = vmatpush2.msra.mxu0 0.0
        %1451 = vmatprep.subr.mxu0 0.0
        %1452 = vmatpush2.msra.mxu0 0.0
        %1453 = vmatprep.subr.mxu0 0.0
        %1454 = vmatpush2.msra.mxu0 0.0
        %1455 = vmatprep.subr.mxu0 0.0
        %1456 = vmatpush2.msra.mxu0 0.0
        %1457 = vmatprep.mubr.f32.mxu0 0.0
        %1458 = vmatmul.mubr.f32.gmra.mxu0 %v1365
        %v1459 = vpop.f32.mrf.mxu0
        %v1460 = vadd.f32 0.0, %v1459
        %v1461 = vpop.f32.mrf.mxu0
        %1462 = vmatprep.mubr.f32.mxu0 0.0
        %1463 = vmatmul.mubr.f32.gmra.mxu0 %v1366
        %v1464 = vpop.f32.mrf.mxu0
        %v1465 = vadd.f32 0.0, %v1464
        %v1466 = vpop.f32.mrf.mxu0
        %1467 = vmatprep.mubr.f32.mxu0 0.0
        %1468 = vmatmul.mubr.f32.gmra.mxu0 %v1367
        %v1469 = vpop.f32.mrf.mxu0
        %v1470 = vadd.f32 0.0, %v1469
        %v1471 = vpop.f32.mrf.mxu0
        %1472 = vmatprep.mubr.f32.mxu0 0.0
        %1473 = vmatmul.mubr.f32.gmra.mxu0 %v1368
        %v1474 = vpop.f32.mrf.mxu0
        %v1475 = vadd.f32 0.0, %v1474
        %v1476 = vpop.f32.mrf.mxu0
        %1477 = vmatprep.mubr.f32.mxu0 0.0
        %1478 = vmatmul.mubr.f32.gmra.mxu0 %v1369
        %v1479 = vpop.f32.mrf.mxu0
        %v1480 = vadd.f32 0.0, %v1479
        %v1481 = vpop.f32.mrf.mxu0
        %1482 = vmatprep.mubr.f32.mxu0 0.0
        %1483 = vmatmul.mubr.f32.gmra.mxu0 %v1370
        %v1484 = vpop.f32.mrf.mxu0
        %v1485 = vadd.f32 0.0, %v1484
        %v1486 = vpop.f32.mrf.mxu0
        %1487 = vmatprep.mubr.f32.mxu0 0.0
        %1488 = vmatmul.mubr.f32.gmra.mxu0 %v1371
        %v1489 = vpop.f32.mrf.mxu0
        %v1490 = vadd.f32 0.0, %v1489
        %v1491 = vpop.f32.mrf.mxu0
        %1492 = vmatprep.mubr.f32.mxu0 0.0
        %1493 = vmatmul.mubr.f32.gmra.mxu0 %v1372
        %v1494 = vpop.f32.mrf.mxu0
        %v1495 = vadd.f32 0.0, %v1494
        %v1496 = vpop.f32.mrf.mxu0
        %1497 = vmatprep.mubr.f32.mxu0 0.0
        %1498 = vmatmul.mubr.f32.gmra.mxu0 %v1373
        %v1499 = vpop.f32.mrf.mxu0
        %v1500 = vadd.f32 0.0, %v1499
        %v1501 = vpop.f32.mrf.mxu0
        %1502 = vmatprep.mubr.f32.mxu0 0.0
        %1503 = vmatmul.mubr.f32.gmra.mxu0 %v1374
        %v1504 = vpop.f32.mrf.mxu0
        %v1505 = vadd.f32 0.0, %v1504
        %v1506 = vpop.f32.mrf.mxu0
        %1507 = vmatprep.mubr.f32.mxu0 0.0
        %1508 = vmatmul.mubr.f32.gmra.mxu0 %v1375
        %v1509 = vpop.f32.mrf.mxu0
        %v1510 = vadd.f32 0.0, %v1509
        %v1511 = vpop.f32.mrf.mxu0
        %1512 = vmatprep.mubr.f32.mxu0 0.0
        %1513 = vmatmul.mubr.f32.gmra.mxu0 %v1376
        %v1514 = vpop.f32.mrf.mxu0
        %v1515 = vadd.f32 0.0, %v1514
        %v1516 = vpop.f32.mrf.mxu0
        %1517 = vdwg.mxu0
        %v1518 = vadd.f32 %v967, %v1460
        %v1519 = vadd.f32 %v968, %v1465
        %v1520 = vadd.f32 %v969, %v1470
        %v1521 = vadd.f32 %v970, %v1475
        %v1522 = vadd.f32 %v971, %v1480
        %v1523 = vadd.f32 %v972, %v1485
        %v1524 = vadd.f32 %v973, %v1490
        %v1525 = vadd.f32 %v974, %v1495
        %v1526 = vadd.f32 %v975, %v1500
        %v1527 = vadd.f32 %v976, %v1505
        %v1528 = vadd.f32 %v977, %v1510
        %v1529 = vadd.f32 %v978, %v1515
        %1530 = vst [vmem:[%s364] sm:$0xff] %v1518
        %1531 = vst [vmem:[%s364 + $0x8] sm:$0xff] %v1519
        %1532 = vst [vmem:[%s364 + $0x10] sm:$0xff] %v1520
        %1533 = vst [vmem:[%s364 + $0x18] sm:$0xff] %v1521
        %1534 = vst [vmem:[%s364 + $0x20] sm:$0xff] %v1522
        %1535 = vst [vmem:[%s364 + $0x28] sm:$0xff] %v1523
        %1536 = vst [vmem:[%s364 + $0x30] sm:$0xff] %v1524
        %1537 = vst [vmem:[%s364 + $0x38] sm:$0xff] %v1525
        %1538 = vst [vmem:[%s364 + $0x40] sm:$0xff] %v1526
        %1539 = vst [vmem:[%s364 + $0x48] sm:$0xff] %v1527
        %1540 = vst [vmem:[%s364 + $0x50] sm:$0xff] %v1528
        %1541 = vst [vmem:[%s364 + $0x58] sm:$0xff] %v1529
        %s1542 = sand.u32 %s190, 1
        %s1543 = scalar_lea.sflag [#allocation4], %s1542
        %s1544 = sand.u32 %s190, 1
        %s1545 = smul.addr %s1544, 96
        %s1546 = scalar_lea.vmem [#allocation10], %s1545
        // Predicated region
        $region61: #{tpu_custom_call.1} parent=43 // pred_check
          %p1547 = pneg %p200
        $region62: #{tpu_custom_call.1} parent=43 // pred_check_branch
          %1549 = sbr.rel (%p1547) target = $region64
        $region63: #{tpu_custom_call.1} parent=43 // pred_region
          %s1550 = smul.u32 12, %s28
          %s1552 = ssub.s32 1536, 1536
          %1553 = vsyncadd %s1543, %s1552
          %s1554 = smul.addr %s27, 12
          %s1555 = sadd.s32 %s1550, %s1554
          %s1556 = smul.addr %s1555, 128
          %s1557 = scalar_lea.hbm %s6, %s1556
          %s1558 = sshll.u32 %s1546, 4
          %s1559 = int_to_ptr.vmem [resolvable:$true] %s1558
          %1564 = dma.vmem_to_hbm [thread:$0]  %s1559, 1536, %s1557, %s1543, 128, 128, 8
        $region64: #{tpu_custom_call.1} parent=43 // pred_fallthru
          _
      $region44: #{tpu_custom_call.1} parent=5 // pred_fallthru
        _
      %p1565 = scmp.le.s32.totalorder 2, %s18
      // Predicated region
      $region65: #{tpu_custom_call.1} parent=5 // pred_check
        %p1566 = pneg %p1565
      $region66: #{tpu_custom_call.1} parent=5 // pred_check_branch
        %1568 = sbr.rel (%p1566) target = $region68
      $region67: #{tpu_custom_call.1} parent=5 // pred_region
        %s1569 = ssub.s32 %s18, 2
        // Predicated region
        $region69: #{tpu_custom_call.1} parent=67 // pred_check
          %p1570 = pneg %p206
        $region70: #{tpu_custom_call.1} parent=67 // pred_check_branch
          %1572 = sbr.rel (%p1570) target = $region72
        $region71: #{tpu_custom_call.1} parent=67 // pred_region
          %s1573 = sand.u32 %s191, 1
          %s1574 = scalar_lea.sflag [#allocation4], %s1573
          %s1575 = sand.u32 %s191, 1
          %s1576 = smul.addr %s1575, 96
          %s1577 = scalar_lea.vmem [#allocation10], %s1576
          %1578 = dma.done %s1574, 1536
        $region72: #{tpu_custom_call.1} parent=67 // pred_fallthru
          _
      $region68: #{tpu_custom_call.1} parent=5 // pred_fallthru
        _
    $region6: #{tpu_custom_call.1} parent=1 // loop_footer
      %s22 = sadd.s32 1, %s18
    $region7: #{tpu_custom_call.1} parent=1 // loop_footer_branch
      %17 = sbr.rel target = $region3
    $region8: #{tpu_custom_call.1} parent=1 // loop_exit
      _
    %1579 = vsyncpa [#allocation3], 1
    %s1580 = scalar_lea.sflag [#allocation3], 1
    %1581 = vsyncpa %s1580, 1
    %1582 = vsyncpa [#allocation6], 1
    %1583 = vsyncpa [#allocation9], 1
    %1584 = vsyncpa [#allocation4], 1
    %s1585 = scalar_lea.sflag [#allocation4], 1
    %1586 = vsyncpa %s1585, 1

</llo_original>
